<compile_context>
chip_gen: v7x
topology: tpu7x:2x2x1
jax: 0.10.0
libtpu: 0.0.40
codegen_flags: <defaults>
</compile_context>

<pallas_src>
import functools

import jax
import jax.numpy as jnp
from jax import lax
from jax.experimental import pallas as pl
from jax.experimental.pallas import tpu as pltpu


# ---------------------------------------------------------------------------
# shared helper (traced inside kernels)
# ---------------------------------------------------------------------------
def _pairwise_sqdist(a, bt):
    """Squared Euclidean distances between a (n, d) and bt (d, m) -> (n, m).

    Per-coordinate broadcast-subtract-square (d == 3, statically unrolled): avoids an
    MXU matmul / in-kernel transpose and is numerically better than a^2 + b^2 - 2ab
    for near-coincident points. The k=0 term initialises d2 directly (review item)."""
    d = a.shape[1]
    diff = a[:, 0:1] - bt[0:1, :]
    d2 = diff * diff
    for k in range(1, d):
        diff = a[:, k:k + 1] - bt[k:k + 1, :]
        d2 = d2 + diff * diff
    return d2


# ---------------------------------------------------------------------------
# Fused CombinedLoss kernel: both Chamfer terms + confidence MSE in one launch
# ---------------------------------------------------------------------------
def _combined_loss_kernel(up_ref, seed_ref, pc2t_all_ref, pc2t_b_ref, pc3_ref, pred_ref,
                          row_ref, cmin_up_ref, cmin_seed_ref):
    # One grid step == one batch element; all blocks are resident in VMEM.
    bt_all = pc2t_all_ref[...].astype(jnp.float32)            # (3, B*M): flattened gt cloud (all batches)

    # ---- Chamfer partials: this batch's upsampled rows vs ALL flattened gt points ----
    a_up = up_ref[0].astype(jnp.float32)                      # (N_up, 3)
    d2_up = _pairwise_sqdist(a_up, bt_all)                    # (N_up, B*M)
    s_up = jnp.sum(jnp.sqrt(jnp.min(d2_up, axis=1, keepdims=True)), keepdims=True)     # (1, 1)
    cmin_up_ref[0] = jnp.min(d2_up, axis=0, keepdims=True)    # (1, B*M) partial column-min (squared)

    # ---- Chamfer partials: this batch's seed rows vs ALL flattened gt points ----
    a_seed = seed_ref[0].astype(jnp.float32)                  # (N_seed, 3)
    d2_seed = _pairwise_sqdist(a_seed, bt_all)                # (N_seed, B*M)
    s_seed = jnp.sum(jnp.sqrt(jnp.min(d2_seed, axis=1, keepdims=True)), keepdims=True)  # (1, 1)
    cmin_seed_ref[0] = jnp.min(d2_seed, axis=0, keepdims=True)

    # ---- Confidence-score MSE (per batch, against this batch's gt points only) ----
    radar = pc3_ref[0].astype(jnp.float32)                    # (N_rad, 3)
    bt_b = pc2t_b_ref[0].astype(jnp.float32)                  # (3, M): this batch's gt points
    d2_c = _pairwise_sqdist(radar, bt_b)                      # (N_rad, M)
    score = jnp.exp(-jnp.sqrt(jnp.min(d2_c, axis=1, keepdims=True)))                    # (N_rad, 1)
    err = pred_ref[0].astype(jnp.float32) - score
    sse = jnp.sum(err * err, keepdims=True)                   # (1, 1)

    # Lane-dense packed per-batch scalars (single unmasked (1,128) store):
    # lane 0 = chamfer-up row-min sum, lane 1 = chamfer-seed row-min sum, lane 2 = conf SSE.
    lane = lax.broadcasted_iota(jnp.int32, (1, 128), 1)
    row = jnp.where(lane == 0, s_up,
          jnp.where(lane == 1, s_seed,
          jnp.where(lane == 2, sse, jnp.float32(0.0))))
    row_ref[0] = row


def combined_loss(pc1, pc2, pc3, *, alpha=0.5):
    """pc1[0]: upsampled pcd (B, N_up, 3); pc1[1]: seed pcd (B, N_seed, 3);
       pc1[3]: predicted confidence (B, N_rad, 1); pc2: gt pcd (B, M, 3); pc3: radar pcd (B, N_rad, 3)."""
    up = jnp.asarray(pc1[0], jnp.float32)
    seed = jnp.asarray(pc1[1], jnp.float32)
    pc2f = jnp.asarray(pc2, jnp.float32)
    pc3f = jnp.asarray(pc3, jnp.float32)
    B, M, d = pc2f.shape
    _, n_up, _ = up.shape
    _, n_seed, _ = seed.shape
    _, n_rad, _ = pc3f.shape
    pred = jnp.reshape(jnp.asarray(pc1[3], jnp.float32), (B, n_rad, 1))
    m_tot = B * M

    # pc2 laid out ONCE per needed view, shared by all three fused loss terms:
    pc2t_all = jnp.reshape(pc2f, (m_tot, d)).T        # (3, B*M): flattened gt (Chamfer), lane-dense
    pc2t_b = jnp.transpose(pc2f, (0, 2, 1))           # (B, 3, M): per-batch gt (confidence)

    flops = int(8 * (B * n_up * m_tot + B * n_seed * m_tot + B * n_rad * M))
    transcendentals = int(B * (n_up + n_seed + 2 * n_rad))
    bytes_accessed = int(4 * (up.size + seed.size + pc2t_all.size + pc2t_b.size
                              + pc3f.size + pred.size + B * (128 + 2 * m_tot)))

    row_out, cmin_up, cmin_seed = pl.pallas_call(
        _combined_loss_kernel,
        out_shape=(
            jax.ShapeDtypeStruct((B, 1, 128), jnp.float32),     # packed per-batch scalars
            jax.ShapeDtypeStruct((B, 1, m_tot), jnp.float32),   # partial col-min (upsampled, squared)
            jax.ShapeDtypeStruct((B, 1, m_tot), jnp.float32),   # partial col-min (seed, squared)
        ),
        grid_spec=pltpu.PrefetchScalarGridSpec(
            num_scalar_prefetch=0,
            grid=(B,),
            in_specs=[
                pl.BlockSpec((1, n_up, d), lambda b: (b, 0, 0)),
                pl.BlockSpec((1, n_seed, d), lambda b: (b, 0, 0)),
                pl.BlockSpec((d, m_tot), lambda b: (0, 0)),       # same block every step -> resident
                pl.BlockSpec((1, d, M), lambda b: (b, 0, 0)),
                pl.BlockSpec((1, n_rad, d), lambda b: (b, 0, 0)),
                pl.BlockSpec((1, n_rad, 1), lambda b: (b, 0, 0)),
            ],
            out_specs=[
                pl.BlockSpec((1, 1, 128), lambda b: (b, 0, 0)),
                pl.BlockSpec((1, 1, m_tot), lambda b: (b, 0, 0)),
                pl.BlockSpec((1, 1, m_tot), lambda b: (b, 0, 0)),
            ],
        ),
        compiler_params=pltpu.CompilerParams(
            dimension_semantics=("parallel",),          # batch steps are independent -> both TCs on v7x
            vmem_limit_bytes=32 << 20,
        ),
        cost_estimate=pl.CostEstimate(
            flops=flops, transcendentals=transcendentals, bytes_accessed=bytes_accessed),
    )(up, seed, pc2t_all, pc2t_b, pc3f, pred)

    # Tiny scalar epilogue in plain JAX (O(B*M) work): combine per-batch partials.
    cd_up = (jnp.sum(row_out[:, 0, 0]) / jnp.float32(B * n_up)
             + jnp.mean(jnp.sqrt(jnp.min(cmin_up[:, 0, :], axis=0))))
    cd_seed = (jnp.sum(row_out[:, 0, 1]) / jnp.float32(B * n_seed)
               + jnp.mean(jnp.sqrt(jnp.min(cmin_seed[:, 0, :], axis=0))))
    confidence_loss = jnp.sum(row_out[:, 0, 2]) / jnp.float32(B * n_rad)
    return confidence_loss + jnp.float32(alpha) * cd_up + cd_seed


# ---------------------------------------------------------------------------
# Earth Mover's Distance (eps-annealed log-domain Sinkhorn, fully in-kernel)
# Defined by the module but unused in CombinedLoss.forward; kept + improved.
# ---------------------------------------------------------------------------
_DEFAULT_EPS_SCHEDULE = ((1.0, 20), (0.3, 20), (0.1, 20), (0.03, 20), (0.01, 20))  # 100 iterations total


def _emd_kernel(p1_ref, p2t_ref, out_ref, *, schedule):
    a = p1_ref[...].astype(jnp.float32)        # (n, 3)
    bt = p2t_ref[...].astype(jnp.float32)      # (3, m)
    n = a.shape[0]
    m = bt.shape[1]

    C = jnp.sqrt(_pairwise_sqdist(a, bt))      # (n, m) Euclidean cost matrix (only live slab)

    log_a = -jnp.log(jnp.float32(n))           # uniform source weights 1/n
    log_b = -jnp.log(jnp.float32(m))           # uniform target weights 1/m

    # TODO(synk): the reference solves the exact network-simplex LP (pyemd); no clean Pallas
    # equivalent, so we use eps-annealed log-domain Sinkhorn (converges to exact EMD as eps->0).

    def lse_rows(M):   # logsumexp over lanes    -> (n, 1)
        mx = jnp.max(M, axis=1, keepdims=True)
        return mx + jnp.log(jnp.sum(jnp.exp(M - mx), axis=1, keepdims=True))

    def lse_cols(M):   # logsumexp over sublanes -> (1, m)
        mx = jnp.max(M, axis=0, keepdims=True)
        return mx + jnp.log(jnp.sum(jnp.exp(M - mx), axis=0, keepdims=True))

    # Unscaled dual potentials carried across annealing stages. The -1/eps scale is fused
    # into the LSE argument, so no scaled copy of C is ever materialised.
    f = jnp.zeros((n, 1), jnp.float32)
    g = jnp.zeros((1, m), jnp.float32)

    n_stages = len(schedule)
    result = jnp.zeros((1, 1), jnp.float32)
    for s, (eps_s, iters_s) in enumerate(schedule):
        eps_c = jnp.float32(eps_s)
        inv_eps = jnp.float32(1.0 / eps_s)
        last = s == n_stages - 1
        inner = iters_s - 1 if last else iters_s

        def body(_, carry, eps_c=eps_c, inv_eps=inv_eps):
            f, g = carry
            # softmin half-steps: each (n, m) slab is built exactly once per half-step.
            f = eps_c * (log_a - lse_rows((g - C) * inv_eps))
            g = eps_c * (log_b - lse_cols((f - C) * inv_eps))
            return f, g

        f, g = lax.fori_loop(0, inner, body, (f, g))

        if last:
            # Final iteration with the primal cost fused into the column LSE: reuses that
            # exp pass and never re-materialises the transport plan.
            f = eps_c * (log_a - lse_rows((g - C) * inv_eps))
            Mlog = (f - C) * inv_eps
            cmax = jnp.max(Mlog, axis=0, keepdims=True)        # (1, m)
            E = jnp.exp(Mlog - cmax)                           # the only exp of this step
            S = jnp.sum(E, axis=0, keepdims=True)              # (1, m)
            W = jnp.sum(E * C, axis=0, keepdims=True)          # (1, m)
            # With g_j = log_b - (cmax_j + log S_j):  sum_i P_ij C_ij = (1/m) W_j / S_j
            result = jnp.sum(W / S, keepdims=True) * jnp.float32(1.0 / m)

    out_ref[...] = result


def earth_movers_distance(pc1, pc2, *, schedule=_DEFAULT_EPS_SCHEDULE):
    """Pallas EMD between the flattened (-1, 3) point clouds; returns a float32 scalar."""
    a = jnp.reshape(pc1, (-1, 3)).astype(jnp.float32)
    b = jnp.reshape(pc2, (-1, 3)).astype(jnp.float32)
    n, d = a.shape
    m = b.shape[0]
    if n != m:
        raise ValueError("Point clouds must have the same number of points for EMD computation.")
    bt = b.T                                    # (3, m): lane-dense, no in-kernel transpose

    total_half_steps = 2 * sum(int(it) for _, it in schedule)
    kernel = functools.partial(_emd_kernel, schedule=tuple(schedule))
    out = pl.pallas_call(
        kernel,
        out_shape=jax.ShapeDtypeStruct((1, 1), jnp.float32),
        grid_spec=pltpu.PrefetchScalarGridSpec(
            num_scalar_prefetch=0,
            grid=(1,),
            in_specs=[
                pl.BlockSpec((n, d), lambda i: (0, 0)),
                pl.BlockSpec((d, m), lambda i: (0, 0)),
            ],
            out_specs=pl.BlockSpec((1, 1), lambda i: (0, 0)),
        ),
        # Single live (n,m) cost slab + per-half-step temporary: fits the 32 MiB scoped
        # budget up to roughly n,m ~ 1.2K (v7x) / larger on v5e/v6e; beyond that a tiled
        # Sinkhorn path would be required (TODO noted at top of file).
        compiler_params=pltpu.CompilerParams(
            dimension_semantics=("arbitrary",),
            vmem_limit_bytes=32 << 20,
        ),
        cost_estimate=pl.CostEstimate(
            flops=int((6 * total_half_steps + 12) * n * m),
            transcendentals=int(total_half_steps * n * m),
            bytes_accessed=int(4 * (n * d + d * m + 1)),
        ),
    )(a, bt)
    return out[0, 0]


# ---------------------------------------------------------------------------
# demo / smoke test
# ---------------------------------------------------------------------------
if __name__ == "__main__":
    key = jax.random.PRNGKey(0)
    k = jax.random.split(key, 6)

    B, M = 2, 128                 # batch, ground-truth points per batch
    N_up, N_seed, N_radar = 128, 64, 64

    pc2 = jax.random.normal(k[0], (B, M, 3), dtype=jnp.float32)         # ground-truth pcd
    pc3 = jax.random.normal(k[1], (B, N_radar, 3), dtype=jnp.float32)   # radar pcd
    pc1 = (
        jax.random.normal(k[2], (B, N_up, 3), dtype=jnp.float32),       # upsampled pcd
        jax.random.normal(k[3], (B, N_seed, 3), dtype=jnp.float32),     # seed pcd
        jax.random.normal(k[4], (B, 32, 3), dtype=jnp.float32),         # unused by forward
        jax.random.uniform(k[5], (B, N_radar, 1), dtype=jnp.float32),   # predicted confidence
    )

    loss = combined_loss(pc1, pc2, pc3, alpha=0.5)
    jax.block_until_ready(loss)

    # Exercise the (unused-by-forward) EMD criterion's Pallas kernel once as well.
    emd_val = earth_movers_distance(pc1[0], pc2)
    jax.block_until_ready(emd_val)

    print("KERNEL_OK")
</pallas_src>

<mosaic_0001>
module attributes {stable_mosaic.version = 11 : i64} {
  func.func @_combined_loss_kernel(%arg0: i32, %arg1: memref<1x128x3xf32, #tpu.memory_space<vmem>>, %arg2: memref<1x64x3xf32, #tpu.memory_space<vmem>>, %arg3: memref<3x256xf32, #tpu.memory_space<vmem>>, %arg4: memref<1x3x128xf32, #tpu.memory_space<vmem>>, %arg5: memref<1x64x3xf32, #tpu.memory_space<vmem>>, %arg6: memref<1x64x1xf32, #tpu.memory_space<vmem>>, %arg7: memref<1x1x128xf32, #tpu.memory_space<vmem>>, %arg8: memref<1x1x256xf32, #tpu.memory_space<vmem>>, %arg9: memref<1x1x256xf32, #tpu.memory_space<vmem>>) attributes {dimension_semantics = [#tpu.dimension_semantics<parallel>], iteration_bounds = array<i64: 2>, scalar_prefetch = 0 : i64, scratch_operands = 0 : i64, tpu.core_type = #tpu.core_type<tc>, window_params = [{transform_indices = @transform_0, window_bounds = array<i64: 1, 128, 3>}, {transform_indices = @transform_1, window_bounds = array<i64: 1, 64, 3>}, {pipeline_mode = #tpu.pipeline_mode<synchronous>, transform_indices = @transform_2, window_bounds = array<i64: 3, 256>}, {transform_indices = @transform_3, window_bounds = array<i64: 1, 3, 128>}, {transform_indices = @transform_4, window_bounds = array<i64: 1, 64, 3>}, {transform_indices = @transform_5, window_bounds = array<i64: 1, 64, 1>}, {transform_indices = @transform_6, window_bounds = array<i64: 1, 1, 128>}, {transform_indices = @transform_7, window_bounds = array<i64: 1, 1, 256>}, {transform_indices = @transform_8, window_bounds = array<i64: 1, 1, 256>}]} {
    %c0 = arith.constant 0 : index
    %c0_0 = arith.constant 0 : index
    %0 = vector.load %arg3[%c0, %c0_0] : memref<3x256xf32, #tpu.memory_space<vmem>>, vector<3x256xf32>
    %c0_1 = arith.constant 0 : index
    %c0_2 = arith.constant 0 : index
    %c0_3 = arith.constant 0 : index
    %1 = vector.load %arg1[%c0_1, %c0_2, %c0_3] : memref<1x128x3xf32, #tpu.memory_space<vmem>>, vector<1x128x3xf32>
    %2 = vector.shape_cast %1 : vector<1x128x3xf32> to vector<128x3xf32>
    %3 = vector.extract_strided_slice %2 {offsets = [0, 0], sizes = [128, 1], strides = [1, 1]} : vector<128x3xf32> to vector<128x1xf32>
    %4 = vector.extract_strided_slice %0 {offsets = [0, 0], sizes = [1, 256], strides = [1, 1]} : vector<3x256xf32> to vector<1x256xf32>
    %5 = vector.broadcast %3 : vector<128x1xf32> to vector<128x256xf32>
    %6 = vector.broadcast %4 : vector<1x256xf32> to vector<128x256xf32>
    %7 = arith.subf %5, %6 : vector<128x256xf32>
    %8 = arith.mulf %7, %7 : vector<128x256xf32>
    %9 = vector.extract_strided_slice %2 {offsets = [0, 1], sizes = [128, 1], strides = [1, 1]} : vector<128x3xf32> to vector<128x1xf32>
    %10 = vector.extract_strided_slice %0 {offsets = [1, 0], sizes = [1, 256], strides = [1, 1]} : vector<3x256xf32> to vector<1x256xf32>
    %11 = vector.broadcast %9 : vector<128x1xf32> to vector<128x256xf32>
    %12 = vector.broadcast %10 : vector<1x256xf32> to vector<128x256xf32>
    %13 = arith.subf %11, %12 : vector<128x256xf32>
    %14 = arith.mulf %13, %13 : vector<128x256xf32>
    %15 = arith.addf %8, %14 : vector<128x256xf32>
    %16 = vector.extract_strided_slice %2 {offsets = [0, 2], sizes = [128, 1], strides = [1, 1]} : vector<128x3xf32> to vector<128x1xf32>
    %17 = vector.extract_strided_slice %0 {offsets = [2, 0], sizes = [1, 256], strides = [1, 1]} : vector<3x256xf32> to vector<1x256xf32>
    %18 = vector.broadcast %16 : vector<128x1xf32> to vector<128x256xf32>
    %19 = vector.broadcast %17 : vector<1x256xf32> to vector<128x256xf32>
    %20 = arith.subf %18, %19 : vector<128x256xf32>
    %21 = arith.mulf %20, %20 : vector<128x256xf32>
    %22 = arith.addf %15, %21 : vector<128x256xf32>
    %cst = arith.constant dense<0x7F800000> : vector<128xf32>
    %23 = vector.multi_reduction <minimumf>, %22, %cst [1] : vector<128x256xf32> to vector<128xf32>
    %24 = vector.shape_cast %23 : vector<128xf32> to vector<128x1xf32>
    %25 = math.sqrt %24 : vector<128x1xf32>
    %26 = vector.shape_cast %25 : vector<128x1xf32> to vector<1x128x1xf32>
    %cst_4 = arith.constant dense<0.000000e+00> : vector<1xf32>
    %27 = vector.multi_reduction <add>, %26, %cst_4 [1, 2] : vector<1x128x1xf32> to vector<1xf32>
    %28 = vector.shape_cast %27 : vector<1xf32> to vector<1x1x1xf32>
    %29 = vector.extract %28[0, 0, 0] : f32 from vector<1x1x1xf32>
    %30 = vector.broadcast %29 : f32 to vector<1x1xf32>
    %cst_5 = arith.constant dense<0x7F800000> : vector<256xf32>
    %31 = vector.multi_reduction <minimumf>, %22, %cst_5 [0] : vector<128x256xf32> to vector<256xf32>
    %32 = vector.shape_cast %31 : vector<256xf32> to vector<1x256xf32>
    %c0_6 = arith.constant 0 : index
    %c0_7 = arith.constant 0 : index
    %c0_8 = arith.constant 0 : index
    %33 = vector.load %arg8[%c0_6, %c0_7, %c0_8] : memref<1x1x256xf32, #tpu.memory_space<vmem>>, vector<1x1x256xf32>
    %34 = vector.shape_cast %33 : vector<1x1x256xf32> to vector<1x256xf32>
    %35 = vector.shape_cast %32 : vector<1x256xf32> to vector<1x1x256xf32>
    tpu.vector_store %arg8[%c0_6, %c0_7, %c0_8], %35 {strides = array<i32>} : memref<1x1x256xf32, #tpu.memory_space<vmem>>, vector<1x1x256xf32>,
    %c0_9 = arith.constant 0 : index
    %c0_10 = arith.constant 0 : index
    %c0_11 = arith.constant 0 : index
    %36 = vector.load %arg2[%c0_9, %c0_10, %c0_11] : memref<1x64x3xf32, #tpu.memory_space<vmem>>, vector<1x64x3xf32>
    %37 = vector.shape_cast %36 : vector<1x64x3xf32> to vector<64x3xf32>
    %38 = vector.extract_strided_slice %37 {offsets = [0, 0], sizes = [64, 1], strides = [1, 1]} : vector<64x3xf32> to vector<64x1xf32>
    %39 = vector.extract_strided_slice %0 {offsets = [0, 0], sizes = [1, 256], strides = [1, 1]} : vector<3x256xf32> to vector<1x256xf32>
    %40 = vector.broadcast %38 : vector<64x1xf32> to vector<64x256xf32>
    %41 = vector.broadcast %39 : vector<1x256xf32> to vector<64x256xf32>
    %42 = arith.subf %40, %41 : vector<64x256xf32>
    %43 = arith.mulf %42, %42 : vector<64x256xf32>
    %44 = vector.extract_strided_slice %37 {offsets = [0, 1], sizes = [64, 1], strides = [1, 1]} : vector<64x3xf32> to vector<64x1xf32>
    %45 = vector.extract_strided_slice %0 {offsets = [1, 0], sizes = [1, 256], strides = [1, 1]} : vector<3x256xf32> to vector<1x256xf32>
    %46 = vector.broadcast %44 : vector<64x1xf32> to vector<64x256xf32>
    %47 = vector.broadcast %45 : vector<1x256xf32> to vector<64x256xf32>
    %48 = arith.subf %46, %47 : vector<64x256xf32>
    %49 = arith.mulf %48, %48 : vector<64x256xf32>
    %50 = arith.addf %43, %49 : vector<64x256xf32>
    %51 = vector.extract_strided_slice %37 {offsets = [0, 2], sizes = [64, 1], strides = [1, 1]} : vector<64x3xf32> to vector<64x1xf32>
    %52 = vector.extract_strided_slice %0 {offsets = [2, 0], sizes = [1, 256], strides = [1, 1]} : vector<3x256xf32> to vector<1x256xf32>
    %53 = vector.broadcast %51 : vector<64x1xf32> to vector<64x256xf32>
    %54 = vector.broadcast %52 : vector<1x256xf32> to vector<64x256xf32>
    %55 = arith.subf %53, %54 : vector<64x256xf32>
    %56 = arith.mulf %55, %55 : vector<64x256xf32>
    %57 = arith.addf %50, %56 : vector<64x256xf32>
    %cst_12 = arith.constant dense<0x7F800000> : vector<64xf32>
    %58 = vector.multi_reduction <minimumf>, %57, %cst_12 [1] : vector<64x256xf32> to vector<64xf32>
    %59 = vector.shape_cast %58 : vector<64xf32> to vector<64x1xf32>
    %60 = math.sqrt %59 : vector<64x1xf32>
    %61 = vector.shape_cast %60 : vector<64x1xf32> to vector<1x64x1xf32>
    %cst_13 = arith.constant dense<0.000000e+00> : vector<1xf32>
    %62 = vector.multi_reduction <add>, %61, %cst_13 [1, 2] : vector<1x64x1xf32> to vector<1xf32>
    %63 = vector.shape_cast %62 : vector<1xf32> to vector<1x1x1xf32>
    %64 = vector.extract %63[0, 0, 0] : f32 from vector<1x1x1xf32>
    %65 = vector.broadcast %64 : f32 to vector<1x1xf32>
    %cst_14 = arith.constant dense<0x7F800000> : vector<256xf32>
    %66 = vector.multi_reduction <minimumf>, %57, %cst_14 [0] : vector<64x256xf32> to vector<256xf32>
    %67 = vector.shape_cast %66 : vector<256xf32> to vector<1x256xf32>
    %c0_15 = arith.constant 0 : index
    %c0_16 = arith.constant 0 : index
    %c0_17 = arith.constant 0 : index
    %68 = vector.load %arg9[%c0_15, %c0_16, %c0_17] : memref<1x1x256xf32, #tpu.memory_space<vmem>>, vector<1x1x256xf32>
    %69 = vector.shape_cast %68 : vector<1x1x256xf32> to vector<1x256xf32>
    %70 = vector.shape_cast %67 : vector<1x256xf32> to vector<1x1x256xf32>
    tpu.vector_store %arg9[%c0_15, %c0_16, %c0_17], %70 {strides = array<i32>} : memref<1x1x256xf32, #tpu.memory_space<vmem>>, vector<1x1x256xf32>,
    %c0_18 = arith.constant 0 : index
    %c0_19 = arith.constant 0 : index
    %c0_20 = arith.constant 0 : index
    %71 = vector.load %arg5[%c0_18, %c0_19, %c0_20] : memref<1x64x3xf32, #tpu.memory_space<vmem>>, vector<1x64x3xf32>
    %72 = vector.shape_cast %71 : vector<1x64x3xf32> to vector<64x3xf32>
    %c0_21 = arith.constant 0 : index
    %c0_22 = arith.constant 0 : index
    %c0_23 = arith.constant 0 : index
    %73 = vector.load %arg4[%c0_21, %c0_22, %c0_23] : memref<1x3x128xf32, #tpu.memory_space<vmem>>, vector<1x3x128xf32>
    %74 = vector.shape_cast %73 : vector<1x3x128xf32> to vector<3x128xf32>
    %75 = vector.extract_strided_slice %72 {offsets = [0, 0], sizes = [64, 1], strides = [1, 1]} : vector<64x3xf32> to vector<64x1xf32>
    %76 = vector.extract_strided_slice %74 {offsets = [0, 0], sizes = [1, 128], strides = [1, 1]} : vector<3x128xf32> to vector<1x128xf32>
    %77 = vector.broadcast %75 : vector<64x1xf32> to vector<64x128xf32>
    %78 = vector.broadcast %76 : vector<1x128xf32> to vector<64x128xf32>
    %79 = arith.subf %77, %78 : vector<64x128xf32>
    %80 = arith.mulf %79, %79 : vector<64x128xf32>
    %81 = vector.extract_strided_slice %72 {offsets = [0, 1], sizes = [64, 1], strides = [1, 1]} : vector<64x3xf32> to vector<64x1xf32>
    %82 = vector.extract_strided_slice %74 {offsets = [1, 0], sizes = [1, 128], strides = [1, 1]} : vector<3x128xf32> to vector<1x128xf32>
    %83 = vector.broadcast %81 : vector<64x1xf32> to vector<64x128xf32>
    %84 = vector.broadcast %82 : vector<1x128xf32> to vector<64x128xf32>
    %85 = arith.subf %83, %84 : vector<64x128xf32>
    %86 = arith.mulf %85, %85 : vector<64x128xf32>
    %87 = arith.addf %80, %86 : vector<64x128xf32>
    %88 = vector.extract_strided_slice %72 {offsets = [0, 2], sizes = [64, 1], strides = [1, 1]} : vector<64x3xf32> to vector<64x1xf32>
    %89 = vector.extract_strided_slice %74 {offsets = [2, 0], sizes = [1, 128], strides = [1, 1]} : vector<3x128xf32> to vector<1x128xf32>
    %90 = vector.broadcast %88 : vector<64x1xf32> to vector<64x128xf32>
    %91 = vector.broadcast %89 : vector<1x128xf32> to vector<64x128xf32>
    %92 = arith.subf %90, %91 : vector<64x128xf32>
    %93 = arith.mulf %92, %92 : vector<64x128xf32>
    %94 = arith.addf %87, %93 : vector<64x128xf32>
    %cst_24 = arith.constant dense<0x7F800000> : vector<64xf32>
    %95 = vector.multi_reduction <minimumf>, %94, %cst_24 [1] : vector<64x128xf32> to vector<64xf32>
    %96 = vector.shape_cast %95 : vector<64xf32> to vector<64x1xf32>
    %97 = math.sqrt %96 : vector<64x1xf32>
    %cst_25 = arith.constant 0.000000e+00 : f32
    %98 = vector.broadcast %cst_25 : f32 to vector<64x1xf32>
    %99 = arith.subf %98, %97 : vector<64x1xf32>
    %100 = math.exp %99 : vector<64x1xf32>
    %c0_26 = arith.constant 0 : index
    %c0_27 = arith.constant 0 : index
    %c0_28 = arith.constant 0 : index
    %101 = vector.load %arg6[%c0_26, %c0_27, %c0_28] : memref<1x64x1xf32, #tpu.memory_space<vmem>>, vector<1x64x1xf32>
    %102 = vector.shape_cast %101 : vector<1x64x1xf32> to vector<64x1xf32>
    %103 = arith.subf %102, %100 : vector<64x1xf32>
    %104 = arith.mulf %103, %103 : vector<64x1xf32>
    %105 = vector.shape_cast %104 : vector<64x1xf32> to vector<1x64x1xf32>
    %cst_29 = arith.constant dense<0.000000e+00> : vector<1xf32>
    %106 = vector.multi_reduction <add>, %105, %cst_29 [1, 2] : vector<1x64x1xf32> to vector<1xf32>
    %107 = vector.shape_cast %106 : vector<1xf32> to vector<1x1x1xf32>
    %108 = vector.extract %107[0, 0, 0] : f32 from vector<1x1x1xf32>
    %109 = vector.broadcast %108 : f32 to vector<1x1xf32>
    %110 = tpu.iota {dimensions = array<i32: 1>} : vector<1x128xi32>
    %c0_i32 = arith.constant 0 : i32
    %111 = vector.broadcast %c0_i32 : i32 to vector<1x128xi32>
    %112 = arith.cmpi eq, %110, %111 : vector<1x128xi32>
    %c1_i32 = arith.constant 1 : i32
    %113 = vector.broadcast %c1_i32 : i32 to vector<1x128xi32>
    %114 = arith.cmpi eq, %110, %113 : vector<1x128xi32>
    %c2_i32 = arith.constant 2 : i32
    %115 = vector.broadcast %c2_i32 : i32 to vector<1x128xi32>
    %116 = arith.cmpi eq, %110, %115 : vector<1x128xi32>
    %cst_30 = arith.constant 0.000000e+00 : f32
    %117 = vector.shape_cast %109 : vector<1x1xf32> to vector<1x1xf32>
    %118 = vector.broadcast %117 : vector<1x1xf32> to vector<1x128xf32>
    %119 = vector.broadcast %cst_30 : f32 to vector<1x128xf32>
    %120 = arith.select %116, %118, %119 : vector<1x128xi1>, vector<1x128xf32>
    %121 = vector.shape_cast %65 : vector<1x1xf32> to vector<1x1xf32>
    %122 = vector.broadcast %121 : vector<1x1xf32> to vector<1x128xf32>
    %123 = arith.select %114, %122, %120 : vector<1x128xi1>, vector<1x128xf32>
    %124 = vector.shape_cast %30 : vector<1x1xf32> to vector<1x1xf32>
    %125 = vector.broadcast %124 : vector<1x1xf32> to vector<1x128xf32>
    %126 = arith.select %112, %125, %123 : vector<1x128xi1>, vector<1x128xf32>
    %c0_31 = arith.constant 0 : index
    %c0_32 = arith.constant 0 : index
    %c0_33 = arith.constant 0 : index
    %127 = vector.load %arg7[%c0_31, %c0_32, %c0_33] : memref<1x1x128xf32, #tpu.memory_space<vmem>>, vector<1x1x128xf32>
    %128 = vector.shape_cast %127 : vector<1x1x128xf32> to vector<1x128xf32>
    %129 = vector.shape_cast %126 : vector<1x128xf32> to vector<1x1x128xf32>
    tpu.vector_store %arg7[%c0_31, %c0_32, %c0_33], %129 {strides = array<i32>} : memref<1x1x128xf32, #tpu.memory_space<vmem>>, vector<1x1x128xf32>,
    return
  }
  func.func @transform_0(%arg0: i32) -> (i32, i32, i32) {
    %c0_i32 = arith.constant 0 : i32
    %c0_i32_0 = arith.constant 0 : i32
    %c0_i32_1 = arith.constant 0 : i32
    return %arg0, %c0_i32, %c0_i32_0 : i32, i32, i32
  }
  func.func @transform_1(%arg0: i32) -> (i32, i32, i32) {
    %c0_i32 = arith.constant 0 : i32
    %c0_i32_0 = arith.constant 0 : i32
    %c0_i32_1 = arith.constant 0 : i32
    return %arg0, %c0_i32, %c0_i32_0 : i32, i32, i32
  }
  func.func @transform_2(%arg0: i32) -> (i32, i32) {
    %c0_i32 = arith.constant 0 : i32
    %c0_i32_0 = arith.constant 0 : i32
    %c0_i32_1 = arith.constant 0 : i32
    return %c0_i32, %c0_i32_0 : i32, i32
  }
  func.func @transform_3(%arg0: i32) -> (i32, i32, i32) {
    %c0_i32 = arith.constant 0 : i32
    %c0_i32_0 = arith.constant 0 : i32
    %c0_i32_1 = arith.constant 0 : i32
    return %arg0, %c0_i32, %c0_i32_0 : i32, i32, i32
  }
  func.func @transform_4(%arg0: i32) -> (i32, i32, i32) {
    %c0_i32 = arith.constant 0 : i32
    %c0_i32_0 = arith.constant 0 : i32
    %c0_i32_1 = arith.constant 0 : i32
    return %arg0, %c0_i32, %c0_i32_0 : i32, i32, i32
  }
  func.func @transform_5(%arg0: i32) -> (i32, i32, i32) {
    %c0_i32 = arith.constant 0 : i32
    %c0_i32_0 = arith.constant 0 : i32
    %c0_i32_1 = arith.constant 0 : i32
    return %arg0, %c0_i32, %c0_i32_0 : i32, i32, i32
  }
  func.func @transform_6(%arg0: i32) -> (i32, i32, i32) {
    %c0_i32 = arith.constant 0 : i32
    %c0_i32_0 = arith.constant 0 : i32
    %c0_i32_1 = arith.constant 0 : i32
    return %arg0, %c0_i32, %c0_i32_0 : i32, i32, i32
  }
  func.func @transform_7(%arg0: i32) -> (i32, i32, i32) {
    %c0_i32 = arith.constant 0 : i32
    %c0_i32_0 = arith.constant 0 : i32
    %c0_i32_1 = arith.constant 0 : i32
    return %arg0, %c0_i32, %c0_i32_0 : i32, i32, i32
  }
  func.func @transform_8(%arg0: i32) -> (i32, i32, i32) {
    %c0_i32 = arith.constant 0 : i32
    %c0_i32_0 = arith.constant 0 : i32
    %c0_i32_1 = arith.constant 0 : i32
    return %arg0, %c0_i32, %c0_i32_0 : i32, i32, i32
  }
}

</mosaic_0001>

<llo_original>
// kernel: tpu_custom_call.1
$region0: #{tpu_custom_call.1}
  #allocation0 [shape = 'u32[]', space=smem, size = 0x4, offset = 0x4, fixed_abs, tag = 'smem constant byte address 0x4 - core index']
  #allocation1 [shape = 'u32[144,128]{1,0:T(1,128)}', space=vmem, size = 0x12000, scoped, tag = 'internal scratch']
  %s0 = inlined_call_operand.vmem [shape: f32[2,128,3], index: 0, kind: input, shape index: {}]
  %s1 = inlined_call_operand.vmem [shape: f32[2,64,3], index: 1, kind: input, shape index: {}]
  %s2 = inlined_call_operand.vmem [shape: f32[3,256], index: 2, kind: input, shape index: {}]
  %s3 = inlined_call_operand.vmem [shape: f32[2,3,128], index: 3, kind: input, shape index: {}]
  %s4 = inlined_call_operand.vmem [shape: f32[2,64,3], index: 4, kind: input, shape index: {}]
  %s5 = inlined_call_operand.vmem [shape: f32[2,64,1], index: 5, kind: input, shape index: {}]
  %s6 = inlined_call_operand.hbm [shape: f32[2,1,128], index: 6, kind: output, shape index: {0}]
  %s7 = inlined_call_operand.hbm [shape: f32[2,1,256], index: 7, kind: output, shape index: {1}]
  %s8 = inlined_call_operand.hbm [shape: f32[2,1,256], index: 8, kind: output, shape index: {2}]
  %9 = xla_tuple %s6, %s7, %s8
  %s10 = sld [smem:[#allocation0]]
  $region73: #{tpu_custom_call.1} parent=0
    _
  %s12 = ssub.s32 1, %s10
  %s13 = scalar_select 0, %s12, %s10
  $region1: #{tpu_custom_call.1} parent=0
    #allocation2 [shape = 'u8[1024]{0}', space=vmem, size = 0x400, scoped, tag = 'output window, operand 0']
    #allocation3 [shape = 's32[2]{0}', space=sflag, size = 0x8, scoped, tag = 'scoped memory for tpu_custom_call.1']
    #allocation4 [shape = 'u8[2048]{0}', space=vmem, size = 0x800, scoped, tag = 'output window, operand 1']
    #allocation5 [shape = 's32[2]{0}', space=sflag, size = 0x8, scoped, tag = 'scoped memory for tpu_custom_call.1']
    #allocation6 [shape = 'u8[2048]{0}', space=vmem, size = 0x800, scoped, tag = 'output window, operand 2']
    %14 = vsyncpa [#allocation3], 0
    %s15 = scalar_lea.sflag [#allocation3], 1
    %16 = vsyncpa %s15, 0
    %17 = vsyncpa [#allocation5], 0
    %s18 = scalar_lea.sflag [#allocation5], 1
    %19 = vsyncpa %s18, 0
    loop: start=0, step=1, limit=4
    $region2: #{tpu_custom_call.1} parent=1 // loop_pre_header
      _
    $region3: #{tpu_custom_call.1} parent=1 // loop_header
      %s21 = sphi 0, %s25
      %p22 = scmp.ge.s32.totalorder %s21, 4
      %s31 = sphi 0, %s33
      %s34 = sphi 0, %s31
      %s35 = sphi 0, %s34
      %s51 = sphi 0, %s35
      %s57 = sphi 0, %s59
      %s60 = sphi 0, %s57
      %s61 = sphi 0, %s60
      %s77 = sphi 0, %s61
      %s81 = sphi 0, %s81
      %s83 = sphi 0, %s81
      %s84 = sphi 0, %s83
      %s98 = sphi 0, %s84
      %s104 = sphi 0, %s106
      %s107 = sphi 0, %s104
      %s108 = sphi 0, %s107
      %s124 = sphi 0, %s108
      %s130 = sphi 0, %s132
      %s133 = sphi 0, %s130
      %s134 = sphi 0, %s133
      %s150 = sphi 0, %s134
      %s156 = sphi 0, %s158
      %s159 = sphi 0, %s156
      %s160 = sphi 0, %s159
      %s176 = sphi 0, %s160
      %s182 = sphi 0, %s184
      %s185 = sphi 0, %s182
      %s186 = sphi 0, %s185
      %s202 = sphi 0, %s186
      %s208 = sphi 0, %s210
      %s211 = sphi 0, %s208
      %s212 = sphi 0, %s211
      %s228 = sphi 0, %s212
      %s234 = sphi 0, %s236
      %s237 = sphi 0, %s234
      %s238 = sphi 0, %s237
      %s254 = sphi 0, %s238
    $region4: #{tpu_custom_call.1} parent=1 // loop_header_branch
      %24 = sbr.rel (%p22) target = $region8
    $region5: #{tpu_custom_call.1} parent=1 // loop_body
      %s26 = ssub.s32 %s21, 1
      %s27 = ssub.s32 %s21, 2
      %s28 = sadd.s32 %s21, 1
      %s29 = ssub.s32 %s21, %s28
      %p30 = scmp.eq.s32.totalorder %s29, 0
      %s32 = sadd.s32 %s31, 1
      %s33 = scalar_select %p30, %s31, %s32
      %p36 = pneg %p30
      %p37 = scmp.eq.s32.totalorder %s21, 1
      %p38 = por %p36, %p37
      %p39 = scmp.ne.s32.totalorder %s31, %s34
      %p40 = scmp.eq.s32.totalorder %s21, 0
      %p41 = por %p39, %p40
      %p42 = scmp.ne.s32.totalorder %s31, %s34
      %p43 = scmp.eq.s32.totalorder %s26, 1
      %p44 = por %p42, %p43
      %p45 = scmp.ne.s32.totalorder %s34, %s35
      %p46 = scmp.eq.s32.totalorder %s26, 0
      %p47 = por %p45, %p46
      %p48 = scmp.ne.s32.totalorder %s34, %s35
      %p49 = scmp.eq.s32.totalorder %s27, 1
      %p50 = por %p48, %p49
      %p52 = scmp.ne.s32.totalorder %s35, %s51
      %p53 = scmp.eq.s32.totalorder %s27, 0
      %p54 = por %p52, %p53
      %s55 = ssub.s32 %s21, %s28
      %p56 = scmp.eq.s32.totalorder %s55, 0
      %s58 = sadd.s32 %s57, 1
      %s59 = scalar_select %p56, %s57, %s58
      %p62 = pneg %p56
      %p63 = scmp.eq.s32.totalorder %s21, 1
      %p64 = por %p62, %p63
      %p65 = scmp.ne.s32.totalorder %s57, %s60
      %p66 = scmp.eq.s32.totalorder %s21, 0
      %p67 = por %p65, %p66
      %p68 = scmp.ne.s32.totalorder %s57, %s60
      %p69 = scmp.eq.s32.totalorder %s26, 1
      %p70 = por %p68, %p69
      %p71 = scmp.ne.s32.totalorder %s60, %s61
      %p72 = scmp.eq.s32.totalorder %s26, 0
      %p73 = por %p71, %p72
      %p74 = scmp.ne.s32.totalorder %s60, %s61
      %p75 = scmp.eq.s32.totalorder %s27, 1
      %p76 = por %p74, %p75
      %p78 = scmp.ne.s32.totalorder %s61, %s77
      %p79 = scmp.eq.s32.totalorder %s27, 0
      %p80 = por %p78, %p79
      %s82 = sadd.s32 %s81, 1
      %p85 = scmp.eq.s32.totalorder %s21, 1
      %p86 = scmp.ne.s32.totalorder %s81, %s83
      %p87 = scmp.eq.s32.totalorder %s21, 0
      %p88 = por %p86, %p87
      %p89 = scmp.ne.s32.totalorder %s81, %s83
      %p90 = scmp.eq.s32.totalorder %s26, 1
      %p91 = por %p89, %p90
      %p92 = scmp.ne.s32.totalorder %s83, %s84
      %p93 = scmp.eq.s32.totalorder %s26, 0
      %p94 = por %p92, %p93
      %p95 = scmp.ne.s32.totalorder %s83, %s84
      %p96 = scmp.eq.s32.totalorder %s27, 1
      %p97 = por %p95, %p96
      %p99 = scmp.ne.s32.totalorder %s84, %s98
      %p100 = scmp.eq.s32.totalorder %s27, 0
      %p101 = por %p99, %p100
      %s102 = ssub.s32 %s21, %s28
      %p103 = scmp.eq.s32.totalorder %s102, 0
      %s105 = sadd.s32 %s104, 1
      %s106 = scalar_select %p103, %s104, %s105
      %p109 = pneg %p103
      %p110 = scmp.eq.s32.totalorder %s21, 1
      %p111 = por %p109, %p110
      %p112 = scmp.ne.s32.totalorder %s104, %s107
      %p113 = scmp.eq.s32.totalorder %s21, 0
      %p114 = por %p112, %p113
      %p115 = scmp.ne.s32.totalorder %s104, %s107
      %p116 = scmp.eq.s32.totalorder %s26, 1
      %p117 = por %p115, %p116
      %p118 = scmp.ne.s32.totalorder %s107, %s108
      %p119 = scmp.eq.s32.totalorder %s26, 0
      %p120 = por %p118, %p119
      %p121 = scmp.ne.s32.totalorder %s107, %s108
      %p122 = scmp.eq.s32.totalorder %s27, 1
      %p123 = por %p121, %p122
      %p125 = scmp.ne.s32.totalorder %s108, %s124
      %p126 = scmp.eq.s32.totalorder %s27, 0
      %p127 = por %p125, %p126
      %s128 = ssub.s32 %s21, %s28
      %p129 = scmp.eq.s32.totalorder %s128, 0
      %s131 = sadd.s32 %s130, 1
      %s132 = scalar_select %p129, %s130, %s131
      %p135 = pneg %p129
      %p136 = scmp.eq.s32.totalorder %s21, 1
      %p137 = por %p135, %p136
      %p138 = scmp.ne.s32.totalorder %s130, %s133
      %p139 = scmp.eq.s32.totalorder %s21, 0
      %p140 = por %p138, %p139
      %p141 = scmp.ne.s32.totalorder %s130, %s133
      %p142 = scmp.eq.s32.totalorder %s26, 1
      %p143 = por %p141, %p142
      %p144 = scmp.ne.s32.totalorder %s133, %s134
      %p145 = scmp.eq.s32.totalorder %s26, 0
      %p146 = por %p144, %p145
      %p147 = scmp.ne.s32.totalorder %s133, %s134
      %p148 = scmp.eq.s32.totalorder %s27, 1
      %p149 = por %p147, %p148
      %p151 = scmp.ne.s32.totalorder %s134, %s150
      %p152 = scmp.eq.s32.totalorder %s27, 0
      %p153 = por %p151, %p152
      %s154 = ssub.s32 %s21, %s28
      %p155 = scmp.eq.s32.totalorder %s154, 0
      %s157 = sadd.s32 %s156, 1
      %s158 = scalar_select %p155, %s156, %s157
      %p161 = pneg %p155
      %p162 = scmp.eq.s32.totalorder %s21, 1
      %p163 = por %p161, %p162
      %p164 = scmp.ne.s32.totalorder %s156, %s159
      %p165 = scmp.eq.s32.totalorder %s21, 0
      %p166 = por %p164, %p165
      %p167 = scmp.ne.s32.totalorder %s156, %s159
      %p168 = scmp.eq.s32.totalorder %s26, 1
      %p169 = por %p167, %p168
      %p170 = scmp.ne.s32.totalorder %s159, %s160
      %p171 = scmp.eq.s32.totalorder %s26, 0
      %p172 = por %p170, %p171
      %p173 = scmp.ne.s32.totalorder %s159, %s160
      %p174 = scmp.eq.s32.totalorder %s27, 1
      %p175 = por %p173, %p174
      %p177 = scmp.ne.s32.totalorder %s160, %s176
      %p178 = scmp.eq.s32.totalorder %s27, 0
      %p179 = por %p177, %p178
      %s180 = ssub.s32 %s21, %s28
      %p181 = scmp.eq.s32.totalorder %s180, 0
      %s183 = sadd.s32 %s182, 1
      %s184 = scalar_select %p181, %s182, %s183
      %p187 = pneg %p181
      %p188 = scmp.eq.s32.totalorder %s21, 1
      %p189 = por %p187, %p188
      %p190 = scmp.ne.s32.totalorder %s182, %s185
      %p191 = scmp.eq.s32.totalorder %s21, 0
      %p192 = por %p190, %p191
      %p193 = scmp.ne.s32.totalorder %s182, %s185
      %p194 = scmp.eq.s32.totalorder %s26, 1
      %p195 = por %p193, %p194
      %p196 = scmp.ne.s32.totalorder %s185, %s186
      %p197 = scmp.eq.s32.totalorder %s26, 0
      %p198 = por %p196, %p197
      %p199 = scmp.ne.s32.totalorder %s185, %s186
      %p200 = scmp.eq.s32.totalorder %s27, 1
      %p201 = por %p199, %p200
      %p203 = scmp.ne.s32.totalorder %s186, %s202
      %p204 = scmp.eq.s32.totalorder %s27, 0
      %p205 = por %p203, %p204
      %s206 = ssub.s32 %s21, %s28
      %p207 = scmp.eq.s32.totalorder %s206, 0
      %s209 = sadd.s32 %s208, 1
      %s210 = scalar_select %p207, %s208, %s209
      %p213 = pneg %p207
      %p214 = scmp.eq.s32.totalorder %s21, 1
      %p215 = por %p213, %p214
      %p216 = scmp.ne.s32.totalorder %s208, %s211
      %p217 = scmp.eq.s32.totalorder %s21, 0
      %p218 = por %p216, %p217
      %p219 = scmp.ne.s32.totalorder %s208, %s211
      %p220 = scmp.eq.s32.totalorder %s26, 1
      %p221 = por %p219, %p220
      %p222 = scmp.ne.s32.totalorder %s211, %s212
      %p223 = scmp.eq.s32.totalorder %s26, 0
      %p224 = por %p222, %p223
      %p225 = scmp.ne.s32.totalorder %s211, %s212
      %p226 = scmp.eq.s32.totalorder %s27, 1
      %p227 = por %p225, %p226
      %p229 = scmp.ne.s32.totalorder %s212, %s228
      %p230 = scmp.eq.s32.totalorder %s27, 0
      %p231 = por %p229, %p230
      %s232 = ssub.s32 %s21, %s28
      %p233 = scmp.eq.s32.totalorder %s232, 0
      %s235 = sadd.s32 %s234, 1
      %s236 = scalar_select %p233, %s234, %s235
      %p239 = pneg %p233
      %p240 = scmp.eq.s32.totalorder %s21, 1
      %p241 = por %p239, %p240
      %p242 = scmp.ne.s32.totalorder %s234, %s237
      %p243 = scmp.eq.s32.totalorder %s21, 0
      %p244 = por %p242, %p243
      %p245 = scmp.ne.s32.totalorder %s234, %s237
      %p246 = scmp.eq.s32.totalorder %s26, 1
      %p247 = por %p245, %p246
      %p248 = scmp.ne.s32.totalorder %s237, %s238
      %p249 = scmp.eq.s32.totalorder %s26, 0
      %p250 = por %p248, %p249
      %p251 = scmp.ne.s32.totalorder %s237, %s238
      %p252 = scmp.eq.s32.totalorder %s27, 1
      %p253 = por %p251, %p252
      %p255 = scmp.ne.s32.totalorder %s238, %s254
      %p256 = scmp.eq.s32.totalorder %s27, 0
      %p257 = por %p255, %p256
      %p258 = scmp.le.s32.totalorder 1, %s21
      %p259 = scmp.lt.s32.totalorder %s21, 3
      %p260 = pnand %p258, %p259
      %p261 = pneg %p260
      // Predicated region
      $region9: #{tpu_custom_call.1} parent=5 // pred_check
        _
      $region10: #{tpu_custom_call.1} parent=5 // pred_check_branch
        %263 = sbr.rel (%p260) target = $region12
      $region11: #{tpu_custom_call.1} parent=5 // pred_region
        %s264 = ssub.s32 %s21, 1
        // Predicated region
        $region13: #{tpu_custom_call.1} parent=11 // pred_check
          %p265 = pneg %p94
        $region14: #{tpu_custom_call.1} parent=11 // pred_check_branch
          %267 = sbr.rel (%p265) target = $region16
        $region15: #{tpu_custom_call.1} parent=11 // pred_region
          _
        $region16: #{tpu_custom_call.1} parent=11 // pred_fallthru
          _
      $region12: #{tpu_custom_call.1} parent=5 // pred_fallthru
        _
      %p268 = scmp.lt.s32.totalorder %s21, 2
      // Predicated region
      $region17: #{tpu_custom_call.1} parent=5 // pred_check
        %p269 = pneg %p268
      $region18: #{tpu_custom_call.1} parent=5 // pred_check_branch
        %271 = sbr.rel (%p269) target = $region20
      $region19: #{tpu_custom_call.1} parent=5 // pred_region
        // Predicated region
        $region21: #{tpu_custom_call.1} parent=19 // pred_check
          %p272 = pneg %p41
        $region22: #{tpu_custom_call.1} parent=19 // pred_check_branch
          %274 = sbr.rel (%p272) target = $region24
        $region23: #{tpu_custom_call.1} parent=19 // pred_region
          %p275 = scmp.lt.s32.totalorder %s21, 1
          %s276 = scalar_select %p275, %s21, 1
          %s277 = smul.addr %s276, 16
          %s278 = smul.addr %s277, 8
          %s279 = scalar_lea.vmem %s0, %s278
        $region24: #{tpu_custom_call.1} parent=19 // pred_fallthru
          _
        // Predicated region
        $region25: #{tpu_custom_call.1} parent=19 // pred_check
          %p280 = pneg %p67
        $region26: #{tpu_custom_call.1} parent=19 // pred_check_branch
          %282 = sbr.rel (%p280) target = $region28
        $region27: #{tpu_custom_call.1} parent=19 // pred_region
          %p283 = scmp.lt.s32.totalorder %s21, 1
          %s284 = scalar_select %p283, %s21, 1
          %s285 = smul.addr %s284, 8
          %s286 = smul.addr %s285, 8
          %s287 = scalar_lea.vmem %s1, %s286
        $region28: #{tpu_custom_call.1} parent=19 // pred_fallthru
          _
        // Predicated region
        $region29: #{tpu_custom_call.1} parent=19 // pred_check
          %p288 = pneg %p114
        $region30: #{tpu_custom_call.1} parent=19 // pred_check_branch
          %290 = sbr.rel (%p288) target = $region32
        $region31: #{tpu_custom_call.1} parent=19 // pred_region
          %p291 = scmp.lt.s32.totalorder %s21, 1
          %s292 = scalar_select %p291, %s21, 1
          %s293 = smul.addr %s292, 4
          %s294 = scalar_lea.vmem %s3, %s293
        $region32: #{tpu_custom_call.1} parent=19 // pred_fallthru
          _
        // Predicated region
        $region33: #{tpu_custom_call.1} parent=19 // pred_check
          %p295 = pneg %p140
        $region34: #{tpu_custom_call.1} parent=19 // pred_check_branch
          %297 = sbr.rel (%p295) target = $region36
        $region35: #{tpu_custom_call.1} parent=19 // pred_region
          %p298 = scmp.lt.s32.totalorder %s21, 1
          %s299 = scalar_select %p298, %s21, 1
          %s300 = smul.addr %s299, 8
          %s301 = smul.addr %s300, 8
          %s302 = scalar_lea.vmem %s4, %s301
        $region36: #{tpu_custom_call.1} parent=19 // pred_fallthru
          _
        // Predicated region
        $region37: #{tpu_custom_call.1} parent=19 // pred_check
          %p303 = pneg %p166
        $region38: #{tpu_custom_call.1} parent=19 // pred_check_branch
          %305 = sbr.rel (%p303) target = $region40
        $region39: #{tpu_custom_call.1} parent=19 // pred_region
          %p306 = scmp.lt.s32.totalorder %s21, 1
          %s307 = scalar_select %p306, %s21, 1
          %s308 = smul.addr %s307, 8
          %s309 = smul.addr %s308, 8
          %s310 = scalar_lea.vmem %s5, %s309
        $region40: #{tpu_custom_call.1} parent=19 // pred_fallthru
          _
      $region20: #{tpu_custom_call.1} parent=5 // pred_fallthru
        _
      %p311 = scmp.le.s32.totalorder 1, %s21
      %p312 = scmp.lt.s32.totalorder %s21, 3
      %p313 = pnand %p311, %p312
      %p314 = pneg %p313
      // Predicated region
      $region41: #{tpu_custom_call.1} parent=5 // pred_check
        _
      $region42: #{tpu_custom_call.1} parent=5 // pred_check_branch
        %316 = sbr.rel (%p313) target = $region44
      $region43: #{tpu_custom_call.1} parent=5 // pred_region
        %s317 = ssub.s32 %s21, 1
        %p318 = scmp.lt.s32.totalorder %s26, 1
        %s319 = scalar_select %p318, %s26, 1
        %s320 = smul.addr %s319, 16
        %s321 = smul.addr %s320, 8
        %s322 = scalar_lea.vmem %s0, %s321
        %p323 = pneg %p47
        %p324 = pneg %p44
        %p325 = scmp.lt.s32.totalorder %s26, 1
        %s326 = scalar_select %p325, %s26, 1
        %s327 = smul.addr %s326, 8
        %s328 = smul.addr %s327, 8
        %s329 = scalar_lea.vmem %s1, %s328
        %p330 = pneg %p73
        %p331 = pneg %p70
        %p332 = pneg %p94
        %p333 = pneg %p91
        %p334 = scmp.lt.s32.totalorder %s26, 1
        %s335 = scalar_select %p334, %s26, 1
        %s336 = smul.addr %s335, 4
        %s337 = scalar_lea.vmem %s3, %s336
        %p338 = pneg %p120
        %p339 = pneg %p117
        %p340 = scmp.lt.s32.totalorder %s26, 1
        %s341 = scalar_select %p340, %s26, 1
        %s342 = smul.addr %s341, 8
        %s343 = smul.addr %s342, 8
        %s344 = scalar_lea.vmem %s4, %s343
        %p345 = pneg %p146
        %p346 = pneg %p143
        %p347 = scmp.lt.s32.totalorder %s26, 1
        %s348 = scalar_select %p347, %s26, 1
        %s349 = smul.addr %s348, 8
        %s350 = smul.addr %s349, 8
        %s351 = scalar_lea.vmem %s5, %s350
        %p352 = pneg %p172
        %p353 = pneg %p169
        %p354 = pneg %p198
        %p355 = pneg %p195
        %s356 = sand.u32 %s185, 1
        %s357 = scalar_lea.sflag [#allocation3], %s356
        %s358 = sand.u32 %s185, 1
        %s359 = scalar_lea.vmem [#allocation2], %s358
        %p360 = pneg %p224
        %p361 = pneg %p221
        %s362 = sand.u32 %s26, 1
        %s363 = scalar_lea.sflag [#allocation5], %s362
        %s364 = sand.u32 %s211, 1
        %s365 = smul.addr %s364, 2
        %s366 = scalar_lea.vmem [#allocation4], %s365
        %p367 = pneg %p250
        %p368 = pneg %p247
        %s369 = sand.u32 %s26, 1
        %s370 = scalar_lea.sflag [#allocation5], %s369
        %s371 = sand.u32 %s237, 1
        %s372 = smul.addr %s371, 2
        %s373 = scalar_lea.vmem [#allocation6], %s372
        %p374 = scmp.lt.s32.totalorder %s26, 1
        %s375 = scalar_select %p374, %s26, 1
        %s376 = smul.addr %s375, 16
        %s377 = smul.addr %s376, 8
        %s378 = scalar_lea.vmem %s0, %s377
        %p379 = scmp.lt.s32.totalorder %s26, 1
        %s380 = scalar_select %p379, %s26, 1
        %s381 = smul.addr %s380, 8
        %s382 = smul.addr %s381, 8
        %s383 = scalar_lea.vmem %s1, %s382
        %p384 = scmp.lt.s32.totalorder %s26, 1
        %s385 = scalar_select %p384, %s26, 1
        %s386 = smul.addr %s385, 4
        %s387 = scalar_lea.vmem %s3, %s386
        %p388 = scmp.lt.s32.totalorder %s26, 1
        %s389 = scalar_select %p388, %s26, 1
        %s390 = smul.addr %s389, 8
        %s391 = smul.addr %s390, 8
        %s392 = scalar_lea.vmem %s4, %s391
        %p393 = scmp.lt.s32.totalorder %s26, 1
        %s394 = scalar_select %p393, %s26, 1
        %s395 = smul.addr %s394, 8
        %s396 = smul.addr %s395, 8
        %s397 = scalar_lea.vmem %s5, %s396
        %v398 = vld [vmem:[%s2] sm:$0x77]
        %v399 = vld [vmem:[%s378] sm:$0xff]
        %v400 = vld [vmem:[%s378 + $0x8] sm:$0xff]
        %v401 = vld [vmem:[%s378 + $0x10] sm:$0xff]
        %v402 = vld [vmem:[%s378 + $0x18] sm:$0xff]
        %v403 = vld [vmem:[%s378 + $0x20] sm:$0xff]
        %v404 = vld [vmem:[%s378 + $0x28] sm:$0xff]
        %v405 = vld [vmem:[%s378 + $0x30] sm:$0xff]
        %v406 = vld [vmem:[%s378 + $0x38] sm:$0xff]
        %v407 = vld [vmem:[%s378 + $0x40] sm:$0xff]
        %v408 = vld [vmem:[%s378 + $0x48] sm:$0xff]
        %v409 = vld [vmem:[%s378 + $0x50] sm:$0xff]
        %v410 = vld [vmem:[%s378 + $0x58] sm:$0xff]
        %v411 = vld [vmem:[%s378 + $0x60] sm:$0xff]
        %v412 = vld [vmem:[%s378 + $0x68] sm:$0xff]
        %v413 = vld [vmem:[%s378 + $0x70] sm:$0xff]
        %v414 = vld [vmem:[%s378 + $0x78] sm:$0xff]
        %416 = vset.pattern.permute.xlu0 0
        %417 = vperm.xlu0 %416, %v399
        %v418 = vpop.permute.xlu0 %417
        %421 = vset.pattern.permute.xlu0 0
        %422 = vperm.xlu0 %421, %v400
        %v423 = vpop.permute.xlu0 %422
        %426 = vset.pattern.permute.xlu0 0
        %427 = vperm.xlu0 %426, %v401
        %v428 = vpop.permute.xlu0 %427
        %431 = vset.pattern.permute.xlu0 0
        %432 = vperm.xlu0 %431, %v402
        %v433 = vpop.permute.xlu0 %432
        %436 = vset.pattern.permute.xlu0 0
        %437 = vperm.xlu0 %436, %v403
        %v438 = vpop.permute.xlu0 %437
        %441 = vset.pattern.permute.xlu0 0
        %442 = vperm.xlu0 %441, %v404
        %v443 = vpop.permute.xlu0 %442
        %446 = vset.pattern.permute.xlu0 0
        %447 = vperm.xlu0 %446, %v405
        %v448 = vpop.permute.xlu0 %447
        %451 = vset.pattern.permute.xlu0 0
        %452 = vperm.xlu0 %451, %v406
        %v453 = vpop.permute.xlu0 %452
        %456 = vset.pattern.permute.xlu0 0
        %457 = vperm.xlu0 %456, %v407
        %v458 = vpop.permute.xlu0 %457
        %461 = vset.pattern.permute.xlu0 0
        %462 = vperm.xlu0 %461, %v408
        %v463 = vpop.permute.xlu0 %462
        %466 = vset.pattern.permute.xlu0 0
        %467 = vperm.xlu0 %466, %v409
        %v468 = vpop.permute.xlu0 %467
        %471 = vset.pattern.permute.xlu0 0
        %472 = vperm.xlu0 %471, %v410
        %v473 = vpop.permute.xlu0 %472
        %476 = vset.pattern.permute.xlu0 0
        %477 = vperm.xlu0 %476, %v411
        %v478 = vpop.permute.xlu0 %477
        %481 = vset.pattern.permute.xlu0 0
        %482 = vperm.xlu0 %481, %v412
        %v483 = vpop.permute.xlu0 %482
        %486 = vset.pattern.permute.xlu0 0
        %487 = vperm.xlu0 %486, %v413
        %v488 = vpop.permute.xlu0 %487
        %491 = vset.pattern.permute.xlu0 0
        %492 = vperm.xlu0 %491, %v414
        %v493 = vpop.permute.xlu0 %492
        %v496 = vlaneseq
        %v497 = vshrl.u32 %v496, 7
        %v498 = vsub.s32 0, %v497
        %v499 = vrot.slane %v398, %v498
        %v500 = vlaneseq
        %v501 = vshrl.u32 %v500, 7
        %v502 = vsub.s32 4, %v501
        %v503 = vrot.slane %v398, %v502
        %v506 = vlaneseq
        %v507 = vshrl.u32 %v506, 7
        %v508 = vsub.s32 0, %v507
        %v509 = vrot.slane %v499, %v508
        %v510 = vlaneseq
        %v511 = vshrl.u32 %v510, 7
        %v512 = vsub.s32 0, %v511
        %v513 = vrot.slane %v503, %v512
        %v514 = vsub.f32 %v418, %v509
        %v515 = vsub.f32 %v418, %v513
        %v516 = vsub.f32 %v423, %v509
        %v517 = vsub.f32 %v423, %v513
        %v518 = vsub.f32 %v428, %v509
        %v519 = vsub.f32 %v428, %v513
        %v520 = vsub.f32 %v433, %v509
        %v521 = vsub.f32 %v433, %v513
        %v522 = vsub.f32 %v438, %v509
        %v523 = vsub.f32 %v438, %v513
        %v524 = vsub.f32 %v443, %v509
        %v525 = vsub.f32 %v443, %v513
        %v526 = vsub.f32 %v448, %v509
        %v527 = vsub.f32 %v448, %v513
        %v528 = vsub.f32 %v453, %v509
        %v529 = vsub.f32 %v453, %v513
        %v530 = vsub.f32 %v458, %v509
        %v531 = vsub.f32 %v458, %v513
        %v532 = vsub.f32 %v463, %v509
        %v533 = vsub.f32 %v463, %v513
        %v534 = vsub.f32 %v468, %v509
        %v535 = vsub.f32 %v468, %v513
        %v536 = vsub.f32 %v473, %v509
        %v537 = vsub.f32 %v473, %v513
        %v538 = vsub.f32 %v478, %v509
        %v539 = vsub.f32 %v478, %v513
        %v540 = vsub.f32 %v483, %v509
        %v541 = vsub.f32 %v483, %v513
        %v542 = vsub.f32 %v488, %v509
        %v543 = vsub.f32 %v488, %v513
        %v544 = vsub.f32 %v493, %v509
        %v545 = vsub.f32 %v493, %v513
        %v546 = vmul.f32 %v514, %v514
        %v547 = vmul.f32 %v515, %v515
        %v548 = vmul.f32 %v516, %v516
        %v549 = vmul.f32 %v517, %v517
        %v550 = vmul.f32 %v518, %v518
        %v551 = vmul.f32 %v519, %v519
        %v552 = vmul.f32 %v520, %v520
        %v553 = vmul.f32 %v521, %v521
        %v554 = vmul.f32 %v522, %v522
        %v555 = vmul.f32 %v523, %v523
        %v556 = vmul.f32 %v524, %v524
        %v557 = vmul.f32 %v525, %v525
        %v558 = vmul.f32 %v526, %v526
        %v559 = vmul.f32 %v527, %v527
        %v560 = vmul.f32 %v528, %v528
        %v561 = vmul.f32 %v529, %v529
        %v562 = vmul.f32 %v530, %v530
        %v563 = vmul.f32 %v531, %v531
        %v564 = vmul.f32 %v532, %v532
        %v565 = vmul.f32 %v533, %v533
        %v566 = vmul.f32 %v534, %v534
        %v567 = vmul.f32 %v535, %v535
        %v568 = vmul.f32 %v536, %v536
        %v569 = vmul.f32 %v537, %v537
        %v570 = vmul.f32 %v538, %v538
        %v571 = vmul.f32 %v539, %v539
        %v572 = vmul.f32 %v540, %v540
        %v573 = vmul.f32 %v541, %v541
        %v574 = vmul.f32 %v542, %v542
        %v575 = vmul.f32 %v543, %v543
        %v576 = vmul.f32 %v544, %v544
        %v577 = vmul.f32 %v545, %v545
        %578 = vset.pattern.permute.xlu0 1
        %579 = vperm.xlu0 %578, %v399
        %v580 = vpop.permute.xlu0 %579
        %582 = vset.pattern.permute.xlu0 1
        %583 = vperm.xlu0 %582, %v400
        %v584 = vpop.permute.xlu0 %583
        %586 = vset.pattern.permute.xlu0 1
        %587 = vperm.xlu0 %586, %v401
        %v588 = vpop.permute.xlu0 %587
        %590 = vset.pattern.permute.xlu0 1
        %591 = vperm.xlu0 %590, %v402
        %v592 = vpop.permute.xlu0 %591
        %594 = vset.pattern.permute.xlu0 1
        %595 = vperm.xlu0 %594, %v403
        %v596 = vpop.permute.xlu0 %595
        %598 = vset.pattern.permute.xlu0 1
        %599 = vperm.xlu0 %598, %v404
        %v600 = vpop.permute.xlu0 %599
        %602 = vset.pattern.permute.xlu0 1
        %603 = vperm.xlu0 %602, %v405
        %v604 = vpop.permute.xlu0 %603
        %606 = vset.pattern.permute.xlu0 1
        %607 = vperm.xlu0 %606, %v406
        %v608 = vpop.permute.xlu0 %607
        %610 = vset.pattern.permute.xlu0 1
        %611 = vperm.xlu0 %610, %v407
        %v612 = vpop.permute.xlu0 %611
        %614 = vset.pattern.permute.xlu0 1
        %615 = vperm.xlu0 %614, %v408
        %v616 = vpop.permute.xlu0 %615
        %618 = vset.pattern.permute.xlu0 1
        %619 = vperm.xlu0 %618, %v409
        %v620 = vpop.permute.xlu0 %619
        %622 = vset.pattern.permute.xlu0 1
        %623 = vperm.xlu0 %622, %v410
        %v624 = vpop.permute.xlu0 %623
        %626 = vset.pattern.permute.xlu0 1
        %627 = vperm.xlu0 %626, %v411
        %v628 = vpop.permute.xlu0 %627
        %630 = vset.pattern.permute.xlu0 1
        %631 = vperm.xlu0 %630, %v412
        %v632 = vpop.permute.xlu0 %631
        %634 = vset.pattern.permute.xlu0 1
        %635 = vperm.xlu0 %634, %v413
        %v636 = vpop.permute.xlu0 %635
        %638 = vset.pattern.permute.xlu0 1
        %639 = vperm.xlu0 %638, %v414
        %v640 = vpop.permute.xlu0 %639
        %v642 = vlaneseq
        %v643 = vshrl.u32 %v642, 7
        %v644 = vsub.s32 1, %v643
        %v645 = vrot.slane %v398, %v644
        %v646 = vlaneseq
        %v647 = vshrl.u32 %v646, 7
        %v648 = vsub.s32 5, %v647
        %v649 = vrot.slane %v398, %v648
        %v652 = vlaneseq
        %v653 = vshrl.u32 %v652, 7
        %v654 = vsub.s32 1, %v653
        %v655 = vrot.slane %v645, %v654
        %v656 = vlaneseq
        %v657 = vshrl.u32 %v656, 7
        %v658 = vsub.s32 1, %v657
        %v659 = vrot.slane %v649, %v658
        %v660 = vsub.f32 %v580, %v655
        %v661 = vsub.f32 %v580, %v659
        %v662 = vsub.f32 %v584, %v655
        %v663 = vsub.f32 %v584, %v659
        %v664 = vsub.f32 %v588, %v655
        %v665 = vsub.f32 %v588, %v659
        %v666 = vsub.f32 %v592, %v655
        %v667 = vsub.f32 %v592, %v659
        %v668 = vsub.f32 %v596, %v655
        %v669 = vsub.f32 %v596, %v659
        %v670 = vsub.f32 %v600, %v655
        %v671 = vsub.f32 %v600, %v659
        %v672 = vsub.f32 %v604, %v655
        %v673 = vsub.f32 %v604, %v659
        %v674 = vsub.f32 %v608, %v655
        %v675 = vsub.f32 %v608, %v659
        %v676 = vsub.f32 %v612, %v655
        %v677 = vsub.f32 %v612, %v659
        %v678 = vsub.f32 %v616, %v655
        %v679 = vsub.f32 %v616, %v659
        %v680 = vsub.f32 %v620, %v655
        %v681 = vsub.f32 %v620, %v659
        %v682 = vsub.f32 %v624, %v655
        %v683 = vsub.f32 %v624, %v659
        %v684 = vsub.f32 %v628, %v655
        %v685 = vsub.f32 %v628, %v659
        %v686 = vsub.f32 %v632, %v655
        %v687 = vsub.f32 %v632, %v659
        %v688 = vsub.f32 %v636, %v655
        %v689 = vsub.f32 %v636, %v659
        %v690 = vsub.f32 %v640, %v655
        %v691 = vsub.f32 %v640, %v659
        %v692 = vmul.f32 %v660, %v660
        %v693 = vmul.f32 %v661, %v661
        %v694 = vmul.f32 %v662, %v662
        %v695 = vmul.f32 %v663, %v663
        %v696 = vmul.f32 %v664, %v664
        %v697 = vmul.f32 %v665, %v665
        %v698 = vmul.f32 %v666, %v666
        %v699 = vmul.f32 %v667, %v667
        %v700 = vmul.f32 %v668, %v668
        %v701 = vmul.f32 %v669, %v669
        %v702 = vmul.f32 %v670, %v670
        %v703 = vmul.f32 %v671, %v671
        %v704 = vmul.f32 %v672, %v672
        %v705 = vmul.f32 %v673, %v673
        %v706 = vmul.f32 %v674, %v674
        %v707 = vmul.f32 %v675, %v675
        %v708 = vmul.f32 %v676, %v676
        %v709 = vmul.f32 %v677, %v677
        %v710 = vmul.f32 %v678, %v678
        %v711 = vmul.f32 %v679, %v679
        %v712 = vmul.f32 %v680, %v680
        %v713 = vmul.f32 %v681, %v681
        %v714 = vmul.f32 %v682, %v682
        %v715 = vmul.f32 %v683, %v683
        %v716 = vmul.f32 %v684, %v684
        %v717 = vmul.f32 %v685, %v685
        %v718 = vmul.f32 %v686, %v686
        %v719 = vmul.f32 %v687, %v687
        %v720 = vmul.f32 %v688, %v688
        %v721 = vmul.f32 %v689, %v689
        %v722 = vmul.f32 %v690, %v690
        %v723 = vmul.f32 %v691, %v691
        %v724 = vadd.f32 %v546, %v692
        %v725 = vadd.f32 %v547, %v693
        %v726 = vadd.f32 %v548, %v694
        %v727 = vadd.f32 %v549, %v695
        %v728 = vadd.f32 %v550, %v696
        %v729 = vadd.f32 %v551, %v697
        %v730 = vadd.f32 %v552, %v698
        %v731 = vadd.f32 %v553, %v699
        %v732 = vadd.f32 %v554, %v700
        %v733 = vadd.f32 %v555, %v701
        %v734 = vadd.f32 %v556, %v702
        %v735 = vadd.f32 %v557, %v703
        %v736 = vadd.f32 %v558, %v704
        %v737 = vadd.f32 %v559, %v705
        %v738 = vadd.f32 %v560, %v706
        %v739 = vadd.f32 %v561, %v707
        %v740 = vadd.f32 %v562, %v708
        %v741 = vadd.f32 %v563, %v709
        %v742 = vadd.f32 %v564, %v710
        %v743 = vadd.f32 %v565, %v711
        %v744 = vadd.f32 %v566, %v712
        %v745 = vadd.f32 %v567, %v713
        %v746 = vadd.f32 %v568, %v714
        %v747 = vadd.f32 %v569, %v715
        %v748 = vadd.f32 %v570, %v716
        %v749 = vadd.f32 %v571, %v717
        %v750 = vadd.f32 %v572, %v718
        %v751 = vadd.f32 %v573, %v719
        %v752 = vadd.f32 %v574, %v720
        %v753 = vadd.f32 %v575, %v721
        %v754 = vadd.f32 %v576, %v722
        %v755 = vadd.f32 %v577, %v723
        %756 = vset.pattern.permute.xlu0 2
        %757 = vperm.xlu0 %756, %v399
        %v758 = vpop.permute.xlu0 %757
        %760 = vset.pattern.permute.xlu0 2
        %761 = vperm.xlu0 %760, %v400
        %v762 = vpop.permute.xlu0 %761
        %764 = vset.pattern.permute.xlu0 2
        %765 = vperm.xlu0 %764, %v401
        %v766 = vpop.permute.xlu0 %765
        %768 = vset.pattern.permute.xlu0 2
        %769 = vperm.xlu0 %768, %v402
        %v770 = vpop.permute.xlu0 %769
        %772 = vset.pattern.permute.xlu0 2
        %773 = vperm.xlu0 %772, %v403
        %v774 = vpop.permute.xlu0 %773
        %776 = vset.pattern.permute.xlu0 2
        %777 = vperm.xlu0 %776, %v404
        %v778 = vpop.permute.xlu0 %777
        %780 = vset.pattern.permute.xlu0 2
        %781 = vperm.xlu0 %780, %v405
        %v782 = vpop.permute.xlu0 %781
        %784 = vset.pattern.permute.xlu0 2
        %785 = vperm.xlu0 %784, %v406
        %v786 = vpop.permute.xlu0 %785
        %788 = vset.pattern.permute.xlu0 2
        %789 = vperm.xlu0 %788, %v407
        %v790 = vpop.permute.xlu0 %789
        %792 = vset.pattern.permute.xlu0 2
        %793 = vperm.xlu0 %792, %v408
        %v794 = vpop.permute.xlu0 %793
        %796 = vset.pattern.permute.xlu0 2
        %797 = vperm.xlu0 %796, %v409
        %v798 = vpop.permute.xlu0 %797
        %800 = vset.pattern.permute.xlu0 2
        %801 = vperm.xlu0 %800, %v410
        %v802 = vpop.permute.xlu0 %801
        %804 = vset.pattern.permute.xlu0 2
        %805 = vperm.xlu0 %804, %v411
        %v806 = vpop.permute.xlu0 %805
        %808 = vset.pattern.permute.xlu0 2
        %809 = vperm.xlu0 %808, %v412
        %v810 = vpop.permute.xlu0 %809
        %812 = vset.pattern.permute.xlu0 2
        %813 = vperm.xlu0 %812, %v413
        %v814 = vpop.permute.xlu0 %813
        %816 = vset.pattern.permute.xlu0 2
        %817 = vperm.xlu0 %816, %v414
        %v818 = vpop.permute.xlu0 %817
        %v820 = vlaneseq
        %v821 = vshrl.u32 %v820, 7
        %v822 = vsub.s32 2, %v821
        %v823 = vrot.slane %v398, %v822
        %v824 = vlaneseq
        %v825 = vshrl.u32 %v824, 7
        %v826 = vsub.s32 6, %v825
        %v827 = vrot.slane %v398, %v826
        %v830 = vlaneseq
        %v831 = vshrl.u32 %v830, 7
        %v832 = vsub.s32 2, %v831
        %v833 = vrot.slane %v823, %v832
        %v834 = vlaneseq
        %v835 = vshrl.u32 %v834, 7
        %v836 = vsub.s32 2, %v835
        %v837 = vrot.slane %v827, %v836
        %v838 = vsub.f32 %v758, %v833
        %v839 = vsub.f32 %v758, %v837
        %v840 = vsub.f32 %v762, %v833
        %v841 = vsub.f32 %v762, %v837
        %v842 = vsub.f32 %v766, %v833
        %v843 = vsub.f32 %v766, %v837
        %v844 = vsub.f32 %v770, %v833
        %v845 = vsub.f32 %v770, %v837
        %v846 = vsub.f32 %v774, %v833
        %v847 = vsub.f32 %v774, %v837
        %v848 = vsub.f32 %v778, %v833
        %v849 = vsub.f32 %v778, %v837
        %v850 = vsub.f32 %v782, %v833
        %v851 = vsub.f32 %v782, %v837
        %v852 = vsub.f32 %v786, %v833
        %v853 = vsub.f32 %v786, %v837
        %v854 = vsub.f32 %v790, %v833
        %v855 = vsub.f32 %v790, %v837
        %v856 = vsub.f32 %v794, %v833
        %v857 = vsub.f32 %v794, %v837
        %v858 = vsub.f32 %v798, %v833
        %v859 = vsub.f32 %v798, %v837
        %v860 = vsub.f32 %v802, %v833
        %v861 = vsub.f32 %v802, %v837
        %v862 = vsub.f32 %v806, %v833
        %v863 = vsub.f32 %v806, %v837
        %v864 = vsub.f32 %v810, %v833
        %v865 = vsub.f32 %v810, %v837
        %v866 = vsub.f32 %v814, %v833
        %v867 = vsub.f32 %v814, %v837
        %v868 = vsub.f32 %v818, %v833
        %v869 = vsub.f32 %v818, %v837
        %v870 = vmul.f32 %v838, %v838
        %v871 = vmul.f32 %v839, %v839
        %v872 = vmul.f32 %v840, %v840
        %v873 = vmul.f32 %v841, %v841
        %v874 = vmul.f32 %v842, %v842
        %v875 = vmul.f32 %v843, %v843
        %v876 = vmul.f32 %v844, %v844
        %v877 = vmul.f32 %v845, %v845
        %v878 = vmul.f32 %v846, %v846
        %v879 = vmul.f32 %v847, %v847
        %v880 = vmul.f32 %v848, %v848
        %v881 = vmul.f32 %v849, %v849
        %v882 = vmul.f32 %v850, %v850
        %v883 = vmul.f32 %v851, %v851
        %v884 = vmul.f32 %v852, %v852
        %v885 = vmul.f32 %v853, %v853
        %v886 = vmul.f32 %v854, %v854
        %v887 = vmul.f32 %v855, %v855
        %v888 = vmul.f32 %v856, %v856
        %v889 = vmul.f32 %v857, %v857
        %v890 = vmul.f32 %v858, %v858
        %v891 = vmul.f32 %v859, %v859
        %v892 = vmul.f32 %v860, %v860
        %v893 = vmul.f32 %v861, %v861
        %v894 = vmul.f32 %v862, %v862
        %v895 = vmul.f32 %v863, %v863
        %v896 = vmul.f32 %v864, %v864
        %v897 = vmul.f32 %v865, %v865
        %v898 = vmul.f32 %v866, %v866
        %v899 = vmul.f32 %v867, %v867
        %v900 = vmul.f32 %v868, %v868
        %v901 = vmul.f32 %v869, %v869
        %v902 = vadd.f32 %v724, %v870
        %v903 = vadd.f32 %v725, %v871
        %v904 = vadd.f32 %v726, %v872
        %v905 = vadd.f32 %v727, %v873
        %v906 = vadd.f32 %v728, %v874
        %v907 = vadd.f32 %v729, %v875
        %v908 = vadd.f32 %v730, %v876
        %v909 = vadd.f32 %v731, %v877
        %v910 = vadd.f32 %v732, %v878
        %v911 = vadd.f32 %v733, %v879
        %v912 = vadd.f32 %v734, %v880
        %v913 = vadd.f32 %v735, %v881
        %v914 = vadd.f32 %v736, %v882
        %v915 = vadd.f32 %v737, %v883
        %v916 = vadd.f32 %v738, %v884
        %v917 = vadd.f32 %v739, %v885
        %v918 = vadd.f32 %v740, %v886
        %v919 = vadd.f32 %v741, %v887
        %v920 = vadd.f32 %v742, %v888
        %v921 = vadd.f32 %v743, %v889
        %v922 = vadd.f32 %v744, %v890
        %v923 = vadd.f32 %v745, %v891
        %v924 = vadd.f32 %v746, %v892
        %v925 = vadd.f32 %v747, %v893
        %v926 = vadd.f32 %v748, %v894
        %v927 = vadd.f32 %v749, %v895
        %v928 = vadd.f32 %v750, %v896
        %v929 = vadd.f32 %v751, %v897
        %v930 = vadd.f32 %v752, %v898
        %v931 = vadd.f32 %v753, %v899
        %v932 = vadd.f32 %v754, %v900
        %v933 = vadd.f32 %v755, %v901
        %v934 = vmin.f32 %v902, %v903
        %935 = vmin.xlane.f32.xlu0 %v934
        %v936 = vpop.xlane.xlu0 %935
        %v937 = vmin.f32 %v904, %v905
        %938 = vmin.xlane.f32.xlu0 %v937
        %v939 = vpop.xlane.xlu0 %938
        %v940 = vmin.f32 %v906, %v907
        %941 = vmin.xlane.f32.xlu0 %v940
        %v942 = vpop.xlane.xlu0 %941
        %v943 = vmin.f32 %v908, %v909
        %944 = vmin.xlane.f32.xlu0 %v943
        %v945 = vpop.xlane.xlu0 %944
        %v946 = vmin.f32 %v910, %v911
        %947 = vmin.xlane.f32.xlu0 %v946
        %v948 = vpop.xlane.xlu0 %947
        %v949 = vmin.f32 %v912, %v913
        %950 = vmin.xlane.f32.xlu0 %v949
        %v951 = vpop.xlane.xlu0 %950
        %v952 = vmin.f32 %v914, %v915
        %953 = vmin.xlane.f32.xlu0 %v952
        %v954 = vpop.xlane.xlu0 %953
        %v955 = vmin.f32 %v916, %v917
        %956 = vmin.xlane.f32.xlu0 %v955
        %v957 = vpop.xlane.xlu0 %956
        %v958 = vmin.f32 %v918, %v919
        %959 = vmin.xlane.f32.xlu0 %v958
        %v960 = vpop.xlane.xlu0 %959
        %v961 = vmin.f32 %v920, %v921
        %962 = vmin.xlane.f32.xlu0 %v961
        %v963 = vpop.xlane.xlu0 %962
        %v964 = vmin.f32 %v922, %v923
        %965 = vmin.xlane.f32.xlu0 %v964
        %v966 = vpop.xlane.xlu0 %965
        %v967 = vmin.f32 %v924, %v925
        %968 = vmin.xlane.f32.xlu0 %v967
        %v969 = vpop.xlane.xlu0 %968
        %v970 = vmin.f32 %v926, %v927
        %971 = vmin.xlane.f32.xlu0 %v970
        %v972 = vpop.xlane.xlu0 %971
        %v973 = vmin.f32 %v928, %v929
        %974 = vmin.xlane.f32.xlu0 %v973
        %v975 = vpop.xlane.xlu0 %974
        %v976 = vmin.f32 %v930, %v931
        %977 = vmin.xlane.f32.xlu0 %v976
        %v978 = vpop.xlane.xlu0 %977
        %v979 = vmin.f32 %v932, %v933
        %980 = vmin.xlane.f32.xlu0 %v979
        %v981 = vpop.xlane.xlu0 %980
        %v982 = vrsqrt.pop %v936
        %v983 = vmul.f32 %v936, %v982
        %vm984 = vcmp.eq.f32.partialorder %v936, inf
        %v985 = vsel %vm984, %v936, %v983
        %vm986 = vcmp.eq.f32.partialorder %v936, 0.0
        %v987 = vand.u32 %v936, 2147483648
        %v988 = vsel %vm986, %v987, %v985
        %v989 = vrsqrt.pop %v939
        %v990 = vmul.f32 %v939, %v989
        %vm991 = vcmp.eq.f32.partialorder %v939, inf
        %v992 = vsel %vm991, %v939, %v990
        %vm993 = vcmp.eq.f32.partialorder %v939, 0.0
        %v994 = vand.u32 %v939, 2147483648
        %v995 = vsel %vm993, %v994, %v992
        %v996 = vrsqrt.pop %v942
        %v997 = vmul.f32 %v942, %v996
        %vm998 = vcmp.eq.f32.partialorder %v942, inf
        %v999 = vsel %vm998, %v942, %v997
        %vm1000 = vcmp.eq.f32.partialorder %v942, 0.0
        %v1001 = vand.u32 %v942, 2147483648
        %v1002 = vsel %vm1000, %v1001, %v999
        %v1003 = vrsqrt.pop %v945
        %v1004 = vmul.f32 %v945, %v1003
        %vm1005 = vcmp.eq.f32.partialorder %v945, inf
        %v1006 = vsel %vm1005, %v945, %v1004
        %vm1007 = vcmp.eq.f32.partialorder %v945, 0.0
        %v1008 = vand.u32 %v945, 2147483648
        %v1009 = vsel %vm1007, %v1008, %v1006
        %v1010 = vrsqrt.pop %v948
        %v1011 = vmul.f32 %v948, %v1010
        %vm1012 = vcmp.eq.f32.partialorder %v948, inf
        %v1013 = vsel %vm1012, %v948, %v1011
        %vm1014 = vcmp.eq.f32.partialorder %v948, 0.0
        %v1015 = vand.u32 %v948, 2147483648
        %v1016 = vsel %vm1014, %v1015, %v1013
        %v1017 = vrsqrt.pop %v951
        %v1018 = vmul.f32 %v951, %v1017
        %vm1019 = vcmp.eq.f32.partialorder %v951, inf
        %v1020 = vsel %vm1019, %v951, %v1018
        %vm1021 = vcmp.eq.f32.partialorder %v951, 0.0
        %v1022 = vand.u32 %v951, 2147483648
        %v1023 = vsel %vm1021, %v1022, %v1020
        %v1024 = vrsqrt.pop %v954
        %v1025 = vmul.f32 %v954, %v1024
        %vm1026 = vcmp.eq.f32.partialorder %v954, inf
        %v1027 = vsel %vm1026, %v954, %v1025
        %vm1028 = vcmp.eq.f32.partialorder %v954, 0.0
        %v1029 = vand.u32 %v954, 2147483648
        %v1030 = vsel %vm1028, %v1029, %v1027
        %v1031 = vrsqrt.pop %v957
        %v1032 = vmul.f32 %v957, %v1031
        %vm1033 = vcmp.eq.f32.partialorder %v957, inf
        %v1034 = vsel %vm1033, %v957, %v1032
        %vm1035 = vcmp.eq.f32.partialorder %v957, 0.0
        %v1036 = vand.u32 %v957, 2147483648
        %v1037 = vsel %vm1035, %v1036, %v1034
        %v1038 = vrsqrt.pop %v960
        %v1039 = vmul.f32 %v960, %v1038
        %vm1040 = vcmp.eq.f32.partialorder %v960, inf
        %v1041 = vsel %vm1040, %v960, %v1039
        %vm1042 = vcmp.eq.f32.partialorder %v960, 0.0
        %v1043 = vand.u32 %v960, 2147483648
        %v1044 = vsel %vm1042, %v1043, %v1041
        %v1045 = vrsqrt.pop %v963
        %v1046 = vmul.f32 %v963, %v1045
        %vm1047 = vcmp.eq.f32.partialorder %v963, inf
        %v1048 = vsel %vm1047, %v963, %v1046
        %vm1049 = vcmp.eq.f32.partialorder %v963, 0.0
        %v1050 = vand.u32 %v963, 2147483648
        %v1051 = vsel %vm1049, %v1050, %v1048
        %v1052 = vrsqrt.pop %v966
        %v1053 = vmul.f32 %v966, %v1052
        %vm1054 = vcmp.eq.f32.partialorder %v966, inf
        %v1055 = vsel %vm1054, %v966, %v1053
        %vm1056 = vcmp.eq.f32.partialorder %v966, 0.0
        %v1057 = vand.u32 %v966, 2147483648
        %v1058 = vsel %vm1056, %v1057, %v1055
        %v1059 = vrsqrt.pop %v969
        %v1060 = vmul.f32 %v969, %v1059
        %vm1061 = vcmp.eq.f32.partialorder %v969, inf
        %v1062 = vsel %vm1061, %v969, %v1060
        %vm1063 = vcmp.eq.f32.partialorder %v969, 0.0
        %v1064 = vand.u32 %v969, 2147483648
        %v1065 = vsel %vm1063, %v1064, %v1062
        %v1066 = vrsqrt.pop %v972
        %v1067 = vmul.f32 %v972, %v1066
        %vm1068 = vcmp.eq.f32.partialorder %v972, inf
        %v1069 = vsel %vm1068, %v972, %v1067
        %vm1070 = vcmp.eq.f32.partialorder %v972, 0.0
        %v1071 = vand.u32 %v972, 2147483648
        %v1072 = vsel %vm1070, %v1071, %v1069
        %v1073 = vrsqrt.pop %v975
        %v1074 = vmul.f32 %v975, %v1073
        %vm1075 = vcmp.eq.f32.partialorder %v975, inf
        %v1076 = vsel %vm1075, %v975, %v1074
        %vm1077 = vcmp.eq.f32.partialorder %v975, 0.0
        %v1078 = vand.u32 %v975, 2147483648
        %v1079 = vsel %vm1077, %v1078, %v1076
        %v1080 = vrsqrt.pop %v978
        %v1081 = vmul.f32 %v978, %v1080
        %vm1082 = vcmp.eq.f32.partialorder %v978, inf
        %v1083 = vsel %vm1082, %v978, %v1081
        %vm1084 = vcmp.eq.f32.partialorder %v978, 0.0
        %v1085 = vand.u32 %v978, 2147483648
        %v1086 = vsel %vm1084, %v1085, %v1083
        %v1087 = vrsqrt.pop %v981
        %v1088 = vmul.f32 %v981, %v1087
        %vm1089 = vcmp.eq.f32.partialorder %v981, inf
        %v1090 = vsel %vm1089, %v981, %v1088
        %vm1091 = vcmp.eq.f32.partialorder %v981, 0.0
        %v1092 = vand.u32 %v981, 2147483648
        %v1093 = vsel %vm1091, %v1092, %v1090
        %vm1094 = vcmask 7168
        %v1095 = vsel %vm1094, %v988, 0.0
        %v1096 = vsel %vm1094, %v995, 0.0
        %v1097 = vadd.f32 %v1095, %v1096
        %v1098 = vsel %vm1094, %v1002, 0.0
        %v1099 = vadd.f32 %v1097, %v1098
        %v1100 = vsel %vm1094, %v1009, 0.0
        %v1101 = vadd.f32 %v1099, %v1100
        %v1102 = vsel %vm1094, %v1016, 0.0
        %v1103 = vadd.f32 %v1101, %v1102
        %v1104 = vsel %vm1094, %v1023, 0.0
        %v1105 = vadd.f32 %v1103, %v1104
        %v1106 = vsel %vm1094, %v1030, 0.0
        %v1107 = vadd.f32 %v1105, %v1106
        %v1108 = vsel %vm1094, %v1037, 0.0
        %v1109 = vadd.f32 %v1107, %v1108
        %v1110 = vsel %vm1094, %v1044, 0.0
        %v1111 = vadd.f32 %v1109, %v1110
        %v1112 = vsel %vm1094, %v1051, 0.0
        %v1113 = vadd.f32 %v1111, %v1112
        %v1114 = vsel %vm1094, %v1058, 0.0
        %v1115 = vadd.f32 %v1113, %v1114
        %v1116 = vsel %vm1094, %v1065, 0.0
        %v1117 = vadd.f32 %v1115, %v1116
        %v1118 = vsel %vm1094, %v1072, 0.0
        %v1119 = vadd.f32 %v1117, %v1118
        %v1120 = vsel %vm1094, %v1079, 0.0
        %v1121 = vadd.f32 %v1119, %v1120
        %v1122 = vsel %vm1094, %v1086, 0.0
        %v1123 = vadd.f32 %v1121, %v1122
        %v1124 = vsel %vm1094, %v1093, 0.0
        %v1125 = vadd.f32 %v1123, %v1124
        %1126 = vadd.xlane.f32.xlu0 %v1125
        %v1127 = vpop.xlane.xlu0 %1126
        %v1128 = vrot.slane %v1127, 4
        %v1129 = vadd.f32 %v1127, %v1128
        %v1130 = vrot.slane %v1129, 2
        %v1131 = vadd.f32 %v1129, %v1130
        %v1132 = vrot.slane %v1131, 1
        %v1133 = vadd.f32 %v1131, %v1132
        %s1134 = vtos %v1133
        %v1135 = vmin.f32 %v902, %v906
        %v1136 = vmin.f32 %v904, %v908
        %v1137 = vmin.f32 %v1135, %v910
        %v1138 = vmin.f32 %v1136, %v912
        %v1139 = vmin.f32 %v1137, %v914
        %v1140 = vmin.f32 %v1138, %v916
        %v1141 = vmin.f32 %v1139, %v918
        %v1142 = vmin.f32 %v1140, %v920
        %v1143 = vmin.f32 %v1141, %v922
        %v1144 = vmin.f32 %v1142, %v924
        %v1145 = vmin.f32 %v1143, %v926
        %v1146 = vmin.f32 %v1144, %v928
        %v1147 = vmin.f32 %v1145, %v930
        %v1148 = vmin.f32 %v1146, %v932
        %v1149 = vmin.f32 %v1147, %v1148
        %v1150 = vrot.slane %v1149, 4
        %v1151 = vmin.f32 %v1149, %v1150
        %v1152 = vrot.slane %v1151, 2
        %v1153 = vmin.f32 %v1151, %v1152
        %v1154 = vrot.slane %v1153, 1
        %v1155 = vmin.f32 %v1153, %v1154
        %v1156 = vmin.f32 %v903, %v907
        %v1157 = vmin.f32 %v905, %v909
        %v1158 = vmin.f32 %v1156, %v911
        %v1159 = vmin.f32 %v1157, %v913
        %v1160 = vmin.f32 %v1158, %v915
        %v1161 = vmin.f32 %v1159, %v917
        %v1162 = vmin.f32 %v1160, %v919
        %v1163 = vmin.f32 %v1161, %v921
        %v1164 = vmin.f32 %v1162, %v923
        %v1165 = vmin.f32 %v1163, %v925
        %v1166 = vmin.f32 %v1164, %v927
        %v1167 = vmin.f32 %v1165, %v929
        %v1168 = vmin.f32 %v1166, %v931
        %v1169 = vmin.f32 %v1167, %v933
        %v1170 = vmin.f32 %v1168, %v1169
        %v1171 = vrot.slane %v1170, 4
        %v1172 = vmin.f32 %v1170, %v1171
        %v1173 = vrot.slane %v1172, 2
        %v1174 = vmin.f32 %v1172, %v1173
        %v1175 = vrot.slane %v1174, 1
        %v1176 = vmin.f32 %v1174, %v1175
        %v1179 = vcombine.low %v1155, %v1176
        %v1181 = vunpack.c.l.s4 1966171168
        %v1182 = vunpack.c.0.s8 %v1181
        %v1183 = vlaneseq
        %v1184 = vshrl.u32 %v1183, 7
        %v1185 = vsub.s32 %v1182, %v1184
        %v1186 = vrot.slane %v1179, %v1185
        %v1188 = vunpack.c.l.s4 1966171168
        %v1189 = vunpack.c.0.s8 %v1188
        %v1190 = vlaneseq
        %v1191 = vshrl.u32 %v1190, 7
        %v1192 = vsub.s32 %v1189, %v1191
        %v1193 = vrot.slane %v1186, %v1192
        %v1195 = vlaneseq
        %vm1196 = vcmp.ge.s32.totalorder %v1195, 0
        %vm1197 = vcmp.lt.s32.totalorder %v1195, 256
        %vm1198 = vmand %vm1196, %vm1197
        %1199 = vst.msk [vmem:[%s366] sm:$0x3] %vm1198, %v1193
        %v1200 = vld [vmem:[%s383] sm:$0xff]
        %v1201 = vld [vmem:[%s383 + $0x8] sm:$0xff]
        %v1202 = vld [vmem:[%s383 + $0x10] sm:$0xff]
        %v1203 = vld [vmem:[%s383 + $0x18] sm:$0xff]
        %v1204 = vld [vmem:[%s383 + $0x20] sm:$0xff]
        %v1205 = vld [vmem:[%s383 + $0x28] sm:$0xff]
        %v1206 = vld [vmem:[%s383 + $0x30] sm:$0xff]
        %v1207 = vld [vmem:[%s383 + $0x38] sm:$0xff]
        %1209 = vset.pattern.permute.xlu0 0
        %1210 = vperm.xlu0 %1209, %v1200
        %v1211 = vpop.permute.xlu0 %1210
        %1214 = vset.pattern.permute.xlu0 0
        %1215 = vperm.xlu0 %1214, %v1201
        %v1216 = vpop.permute.xlu0 %1215
        %1219 = vset.pattern.permute.xlu0 0
        %1220 = vperm.xlu0 %1219, %v1202
        %v1221 = vpop.permute.xlu0 %1220
        %1224 = vset.pattern.permute.xlu0 0
        %1225 = vperm.xlu0 %1224, %v1203
        %v1226 = vpop.permute.xlu0 %1225
        %1229 = vset.pattern.permute.xlu0 0
        %1230 = vperm.xlu0 %1229, %v1204
        %v1231 = vpop.permute.xlu0 %1230
        %1234 = vset.pattern.permute.xlu0 0
        %1235 = vperm.xlu0 %1234, %v1205
        %v1236 = vpop.permute.xlu0 %1235
        %1239 = vset.pattern.permute.xlu0 0
        %1240 = vperm.xlu0 %1239, %v1206
        %v1241 = vpop.permute.xlu0 %1240
        %1244 = vset.pattern.permute.xlu0 0
        %1245 = vperm.xlu0 %1244, %v1207
        %v1246 = vpop.permute.xlu0 %1245
        %v1248 = vsub.f32 %v1211, %v509
        %v1249 = vsub.f32 %v1211, %v513
        %v1250 = vsub.f32 %v1216, %v509
        %v1251 = vsub.f32 %v1216, %v513
        %v1252 = vsub.f32 %v1221, %v509
        %v1253 = vsub.f32 %v1221, %v513
        %v1254 = vsub.f32 %v1226, %v509
        %v1255 = vsub.f32 %v1226, %v513
        %v1256 = vsub.f32 %v1231, %v509
        %v1257 = vsub.f32 %v1231, %v513
        %v1258 = vsub.f32 %v1236, %v509
        %v1259 = vsub.f32 %v1236, %v513
        %v1260 = vsub.f32 %v1241, %v509
        %v1261 = vsub.f32 %v1241, %v513
        %v1262 = vsub.f32 %v1246, %v509
        %v1263 = vsub.f32 %v1246, %v513
        %v1264 = vmul.f32 %v1248, %v1248
        %v1265 = vmul.f32 %v1249, %v1249
        %v1266 = vmul.f32 %v1250, %v1250
        %v1267 = vmul.f32 %v1251, %v1251
        %v1268 = vmul.f32 %v1252, %v1252
        %v1269 = vmul.f32 %v1253, %v1253
        %v1270 = vmul.f32 %v1254, %v1254
        %v1271 = vmul.f32 %v1255, %v1255
        %v1272 = vmul.f32 %v1256, %v1256
        %v1273 = vmul.f32 %v1257, %v1257
        %v1274 = vmul.f32 %v1258, %v1258
        %v1275 = vmul.f32 %v1259, %v1259
        %v1276 = vmul.f32 %v1260, %v1260
        %v1277 = vmul.f32 %v1261, %v1261
        %v1278 = vmul.f32 %v1262, %v1262
        %v1279 = vmul.f32 %v1263, %v1263
        %1280 = vset.pattern.permute.xlu0 1
        %1281 = vperm.xlu0 %1280, %v1200
        %v1282 = vpop.permute.xlu0 %1281
        %1284 = vset.pattern.permute.xlu0 1
        %1285 = vperm.xlu0 %1284, %v1201
        %v1286 = vpop.permute.xlu0 %1285
        %1288 = vset.pattern.permute.xlu0 1
        %1289 = vperm.xlu0 %1288, %v1202
        %v1290 = vpop.permute.xlu0 %1289
        %1292 = vset.pattern.permute.xlu0 1
        %1293 = vperm.xlu0 %1292, %v1203
        %v1294 = vpop.permute.xlu0 %1293
        %1296 = vset.pattern.permute.xlu0 1
        %1297 = vperm.xlu0 %1296, %v1204
        %v1298 = vpop.permute.xlu0 %1297
        %1300 = vset.pattern.permute.xlu0 1
        %1301 = vperm.xlu0 %1300, %v1205
        %v1302 = vpop.permute.xlu0 %1301
        %1304 = vset.pattern.permute.xlu0 1
        %1305 = vperm.xlu0 %1304, %v1206
        %v1306 = vpop.permute.xlu0 %1305
        %1308 = vset.pattern.permute.xlu0 1
        %1309 = vperm.xlu0 %1308, %v1207
        %v1310 = vpop.permute.xlu0 %1309
        %v1312 = vsub.f32 %v1282, %v655
        %v1313 = vsub.f32 %v1282, %v659
        %v1314 = vsub.f32 %v1286, %v655
        %v1315 = vsub.f32 %v1286, %v659
        %v1316 = vsub.f32 %v1290, %v655
        %v1317 = vsub.f32 %v1290, %v659
        %v1318 = vsub.f32 %v1294, %v655
        %v1319 = vsub.f32 %v1294, %v659
        %v1320 = vsub.f32 %v1298, %v655
        %v1321 = vsub.f32 %v1298, %v659
        %v1322 = vsub.f32 %v1302, %v655
        %v1323 = vsub.f32 %v1302, %v659
        %v1324 = vsub.f32 %v1306, %v655
        %v1325 = vsub.f32 %v1306, %v659
        %v1326 = vsub.f32 %v1310, %v655
        %v1327 = vsub.f32 %v1310, %v659
        %v1328 = vmul.f32 %v1312, %v1312
        %v1329 = vmul.f32 %v1313, %v1313
        %v1330 = vmul.f32 %v1314, %v1314
        %v1331 = vmul.f32 %v1315, %v1315
        %v1332 = vmul.f32 %v1316, %v1316
        %v1333 = vmul.f32 %v1317, %v1317
        %v1334 = vmul.f32 %v1318, %v1318
        %v1335 = vmul.f32 %v1319, %v1319
        %v1336 = vmul.f32 %v1320, %v1320
        %v1337 = vmul.f32 %v1321, %v1321
        %v1338 = vmul.f32 %v1322, %v1322
        %v1339 = vmul.f32 %v1323, %v1323
        %v1340 = vmul.f32 %v1324, %v1324
        %v1341 = vmul.f32 %v1325, %v1325
        %v1342 = vmul.f32 %v1326, %v1326
        %v1343 = vmul.f32 %v1327, %v1327
        %v1344 = vadd.f32 %v1264, %v1328
        %v1345 = vadd.f32 %v1265, %v1329
        %v1346 = vadd.f32 %v1266, %v1330
        %v1347 = vadd.f32 %v1267, %v1331
        %v1348 = vadd.f32 %v1268, %v1332
        %v1349 = vadd.f32 %v1269, %v1333
        %v1350 = vadd.f32 %v1270, %v1334
        %v1351 = vadd.f32 %v1271, %v1335
        %v1352 = vadd.f32 %v1272, %v1336
        %v1353 = vadd.f32 %v1273, %v1337
        %v1354 = vadd.f32 %v1274, %v1338
        %v1355 = vadd.f32 %v1275, %v1339
        %v1356 = vadd.f32 %v1276, %v1340
        %v1357 = vadd.f32 %v1277, %v1341
        %v1358 = vadd.f32 %v1278, %v1342
        %v1359 = vadd.f32 %v1279, %v1343
        %1360 = vset.pattern.permute.xlu0 2
        %1361 = vperm.xlu0 %1360, %v1200
        %v1362 = vpop.permute.xlu0 %1361
        %1364 = vset.pattern.permute.xlu0 2
        %1365 = vperm.xlu0 %1364, %v1201
        %v1366 = vpop.permute.xlu0 %1365
        %1368 = vset.pattern.permute.xlu0 2
        %1369 = vperm.xlu0 %1368, %v1202
        %v1370 = vpop.permute.xlu0 %1369
        %1372 = vset.pattern.permute.xlu0 2
        %1373 = vperm.xlu0 %1372, %v1203
        %v1374 = vpop.permute.xlu0 %1373
        %1376 = vset.pattern.permute.xlu0 2
        %1377 = vperm.xlu0 %1376, %v1204
        %v1378 = vpop.permute.xlu0 %1377
        %1380 = vset.pattern.permute.xlu0 2
        %1381 = vperm.xlu0 %1380, %v1205
        %v1382 = vpop.permute.xlu0 %1381
        %1384 = vset.pattern.permute.xlu0 2
        %1385 = vperm.xlu0 %1384, %v1206
        %v1386 = vpop.permute.xlu0 %1385
        %1388 = vset.pattern.permute.xlu0 2
        %1389 = vperm.xlu0 %1388, %v1207
        %v1390 = vpop.permute.xlu0 %1389
        %v1392 = vsub.f32 %v1362, %v833
        %v1393 = vsub.f32 %v1362, %v837
        %v1394 = vsub.f32 %v1366, %v833
        %v1395 = vsub.f32 %v1366, %v837
        %v1396 = vsub.f32 %v1370, %v833
        %v1397 = vsub.f32 %v1370, %v837
        %v1398 = vsub.f32 %v1374, %v833
        %v1399 = vsub.f32 %v1374, %v837
        %v1400 = vsub.f32 %v1378, %v833
        %v1401 = vsub.f32 %v1378, %v837
        %v1402 = vsub.f32 %v1382, %v833
        %v1403 = vsub.f32 %v1382, %v837
        %v1404 = vsub.f32 %v1386, %v833
        %v1405 = vsub.f32 %v1386, %v837
        %v1406 = vsub.f32 %v1390, %v833
        %v1407 = vsub.f32 %v1390, %v837
        %v1408 = vmul.f32 %v1392, %v1392
        %v1409 = vmul.f32 %v1393, %v1393
        %v1410 = vmul.f32 %v1394, %v1394
        %v1411 = vmul.f32 %v1395, %v1395
        %v1412 = vmul.f32 %v1396, %v1396
        %v1413 = vmul.f32 %v1397, %v1397
        %v1414 = vmul.f32 %v1398, %v1398
        %v1415 = vmul.f32 %v1399, %v1399
        %v1416 = vmul.f32 %v1400, %v1400
        %v1417 = vmul.f32 %v1401, %v1401
        %v1418 = vmul.f32 %v1402, %v1402
        %v1419 = vmul.f32 %v1403, %v1403
        %v1420 = vmul.f32 %v1404, %v1404
        %v1421 = vmul.f32 %v1405, %v1405
        %v1422 = vmul.f32 %v1406, %v1406
        %v1423 = vmul.f32 %v1407, %v1407
        %v1424 = vadd.f32 %v1344, %v1408
        %v1425 = vadd.f32 %v1345, %v1409
        %v1426 = vadd.f32 %v1346, %v1410
        %v1427 = vadd.f32 %v1347, %v1411
        %v1428 = vadd.f32 %v1348, %v1412
        %v1429 = vadd.f32 %v1349, %v1413
        %v1430 = vadd.f32 %v1350, %v1414
        %v1431 = vadd.f32 %v1351, %v1415
        %v1432 = vadd.f32 %v1352, %v1416
        %v1433 = vadd.f32 %v1353, %v1417
        %v1434 = vadd.f32 %v1354, %v1418
        %v1435 = vadd.f32 %v1355, %v1419
        %v1436 = vadd.f32 %v1356, %v1420
        %v1437 = vadd.f32 %v1357, %v1421
        %v1438 = vadd.f32 %v1358, %v1422
        %v1439 = vadd.f32 %v1359, %v1423
        %v1440 = vmin.f32 %v1424, %v1425
        %1441 = vmin.xlane.f32.xlu0 %v1440
        %v1442 = vpop.xlane.xlu0 %1441
        %v1443 = vmin.f32 %v1426, %v1427
        %1444 = vmin.xlane.f32.xlu0 %v1443
        %v1445 = vpop.xlane.xlu0 %1444
        %v1446 = vmin.f32 %v1428, %v1429
        %1447 = vmin.xlane.f32.xlu0 %v1446
        %v1448 = vpop.xlane.xlu0 %1447
        %v1449 = vmin.f32 %v1430, %v1431
        %1450 = vmin.xlane.f32.xlu0 %v1449
        %v1451 = vpop.xlane.xlu0 %1450
        %v1452 = vmin.f32 %v1432, %v1433
        %1453 = vmin.xlane.f32.xlu0 %v1452
        %v1454 = vpop.xlane.xlu0 %1453
        %v1455 = vmin.f32 %v1434, %v1435
        %1456 = vmin.xlane.f32.xlu0 %v1455
        %v1457 = vpop.xlane.xlu0 %1456
        %v1458 = vmin.f32 %v1436, %v1437
        %1459 = vmin.xlane.f32.xlu0 %v1458
        %v1460 = vpop.xlane.xlu0 %1459
        %v1461 = vmin.f32 %v1438, %v1439
        %1462 = vmin.xlane.f32.xlu0 %v1461
        %v1463 = vpop.xlane.xlu0 %1462
        %v1464 = vrsqrt.pop %v1442
        %v1465 = vmul.f32 %v1442, %v1464
        %vm1466 = vcmp.eq.f32.partialorder %v1442, inf
        %v1467 = vsel %vm1466, %v1442, %v1465
        %vm1468 = vcmp.eq.f32.partialorder %v1442, 0.0
        %v1469 = vand.u32 %v1442, 2147483648
        %v1470 = vsel %vm1468, %v1469, %v1467
        %v1471 = vrsqrt.pop %v1445
        %v1472 = vmul.f32 %v1445, %v1471
        %vm1473 = vcmp.eq.f32.partialorder %v1445, inf
        %v1474 = vsel %vm1473, %v1445, %v1472
        %vm1475 = vcmp.eq.f32.partialorder %v1445, 0.0
        %v1476 = vand.u32 %v1445, 2147483648
        %v1477 = vsel %vm1475, %v1476, %v1474
        %v1478 = vrsqrt.pop %v1448
        %v1479 = vmul.f32 %v1448, %v1478
        %vm1480 = vcmp.eq.f32.partialorder %v1448, inf
        %v1481 = vsel %vm1480, %v1448, %v1479
        %vm1482 = vcmp.eq.f32.partialorder %v1448, 0.0
        %v1483 = vand.u32 %v1448, 2147483648
        %v1484 = vsel %vm1482, %v1483, %v1481
        %v1485 = vrsqrt.pop %v1451
        %v1486 = vmul.f32 %v1451, %v1485
        %vm1487 = vcmp.eq.f32.partialorder %v1451, inf
        %v1488 = vsel %vm1487, %v1451, %v1486
        %vm1489 = vcmp.eq.f32.partialorder %v1451, 0.0
        %v1490 = vand.u32 %v1451, 2147483648
        %v1491 = vsel %vm1489, %v1490, %v1488
        %v1492 = vrsqrt.pop %v1454
        %v1493 = vmul.f32 %v1454, %v1492
        %vm1494 = vcmp.eq.f32.partialorder %v1454, inf
        %v1495 = vsel %vm1494, %v1454, %v1493
        %vm1496 = vcmp.eq.f32.partialorder %v1454, 0.0
        %v1497 = vand.u32 %v1454, 2147483648
        %v1498 = vsel %vm1496, %v1497, %v1495
        %v1499 = vrsqrt.pop %v1457
        %v1500 = vmul.f32 %v1457, %v1499
        %vm1501 = vcmp.eq.f32.partialorder %v1457, inf
        %v1502 = vsel %vm1501, %v1457, %v1500
        %vm1503 = vcmp.eq.f32.partialorder %v1457, 0.0
        %v1504 = vand.u32 %v1457, 2147483648
        %v1505 = vsel %vm1503, %v1504, %v1502
        %v1506 = vrsqrt.pop %v1460
        %v1507 = vmul.f32 %v1460, %v1506
        %vm1508 = vcmp.eq.f32.partialorder %v1460, inf
        %v1509 = vsel %vm1508, %v1460, %v1507
        %vm1510 = vcmp.eq.f32.partialorder %v1460, 0.0
        %v1511 = vand.u32 %v1460, 2147483648
        %v1512 = vsel %vm1510, %v1511, %v1509
        %v1513 = vrsqrt.pop %v1463
        %v1514 = vmul.f32 %v1463, %v1513
        %vm1515 = vcmp.eq.f32.partialorder %v1463, inf
        %v1516 = vsel %vm1515, %v1463, %v1514
        %vm1517 = vcmp.eq.f32.partialorder %v1463, 0.0
        %v1518 = vand.u32 %v1463, 2147483648
        %v1519 = vsel %vm1517, %v1518, %v1516
        %v1520 = vsel %vm1094, %v1470, 0.0
        %v1521 = vsel %vm1094, %v1477, 0.0
        %v1522 = vadd.f32 %v1520, %v1521
        %v1523 = vsel %vm1094, %v1484, 0.0
        %v1524 = vadd.f32 %v1522, %v1523
        %v1525 = vsel %vm1094, %v1491, 0.0
        %v1526 = vadd.f32 %v1524, %v1525
        %v1527 = vsel %vm1094, %v1498, 0.0
        %v1528 = vadd.f32 %v1526, %v1527
        %v1529 = vsel %vm1094, %v1505, 0.0
        %v1530 = vadd.f32 %v1528, %v1529
        %v1531 = vsel %vm1094, %v1512, 0.0
        %v1532 = vadd.f32 %v1530, %v1531
        %v1533 = vsel %vm1094, %v1519, 0.0
        %v1534 = vadd.f32 %v1532, %v1533
        %1535 = vadd.xlane.f32.xlu0 %v1534
        %v1536 = vpop.xlane.xlu0 %1535
        %v1537 = vrot.slane %v1536, 4
        %v1538 = vadd.f32 %v1536, %v1537
        %v1539 = vrot.slane %v1538, 2
        %v1540 = vadd.f32 %v1538, %v1539
        %v1541 = vrot.slane %v1540, 1
        %v1542 = vadd.f32 %v1540, %v1541
        %s1543 = vtos %v1542
        %v1544 = vmin.f32 %v1424, %v1428
        %v1545 = vmin.f32 %v1426, %v1430
        %v1546 = vmin.f32 %v1544, %v1432
        %v1547 = vmin.f32 %v1545, %v1434
        %v1548 = vmin.f32 %v1546, %v1436
        %v1549 = vmin.f32 %v1547, %v1438
        %v1550 = vmin.f32 %v1548, %v1549
        %v1551 = vrot.slane %v1550, 4
        %v1552 = vmin.f32 %v1550, %v1551
        %v1553 = vrot.slane %v1552, 2
        %v1554 = vmin.f32 %v1552, %v1553
        %v1555 = vrot.slane %v1554, 1
        %v1556 = vmin.f32 %v1554, %v1555
        %v1557 = vmin.f32 %v1425, %v1429
        %v1558 = vmin.f32 %v1427, %v1431
        %v1559 = vmin.f32 %v1557, %v1433
        %v1560 = vmin.f32 %v1558, %v1435
        %v1561 = vmin.f32 %v1559, %v1437
        %v1562 = vmin.f32 %v1560, %v1439
        %v1563 = vmin.f32 %v1561, %v1562
        %v1564 = vrot.slane %v1563, 4
        %v1565 = vmin.f32 %v1563, %v1564
        %v1566 = vrot.slane %v1565, 2
        %v1567 = vmin.f32 %v1565, %v1566
        %v1568 = vrot.slane %v1567, 1
        %v1569 = vmin.f32 %v1567, %v1568
        %v1572 = vcombine.low %v1556, %v1569
        %v1574 = vunpack.c.l.s4 1966171168
        %v1575 = vunpack.c.0.s8 %v1574
        %v1576 = vlaneseq
        %v1577 = vshrl.u32 %v1576, 7
        %v1578 = vsub.s32 %v1575, %v1577
        %v1579 = vrot.slane %v1572, %v1578
        %v1581 = vunpack.c.l.s4 1966171168
        %v1582 = vunpack.c.0.s8 %v1581
        %v1583 = vlaneseq
        %v1584 = vshrl.u32 %v1583, 7
        %v1585 = vsub.s32 %v1582, %v1584
        %v1586 = vrot.slane %v1579, %v1585
        %1588 = vst.msk [vmem:[%s373] sm:$0x3] %vm1198, %v1586
        %v1589 = vld [vmem:[%s392] sm:$0xff]
        %v1590 = vld [vmem:[%s392 + $0x8] sm:$0xff]
        %v1591 = vld [vmem:[%s392 + $0x10] sm:$0xff]
        %v1592 = vld [vmem:[%s392 + $0x18] sm:$0xff]
        %v1593 = vld [vmem:[%s392 + $0x20] sm:$0xff]
        %v1594 = vld [vmem:[%s392 + $0x28] sm:$0xff]
        %v1595 = vld [vmem:[%s392 + $0x30] sm:$0xff]
        %v1596 = vld [vmem:[%s392 + $0x38] sm:$0xff]
        %v1597 = vld [vmem:[%s387] sm:$0x7]
        %1599 = vset.pattern.permute.xlu0 0
        %1600 = vperm.xlu0 %1599, %v1589
        %v1601 = vpop.permute.xlu0 %1600
        %1604 = vset.pattern.permute.xlu0 0
        %1605 = vperm.xlu0 %1604, %v1590
        %v1606 = vpop.permute.xlu0 %1605
        %1609 = vset.pattern.permute.xlu0 0
        %1610 = vperm.xlu0 %1609, %v1591
        %v1611 = vpop.permute.xlu0 %1610
        %1614 = vset.pattern.permute.xlu0 0
        %1615 = vperm.xlu0 %1614, %v1592
        %v1616 = vpop.permute.xlu0 %1615
        %1619 = vset.pattern.permute.xlu0 0
        %1620 = vperm.xlu0 %1619, %v1593
        %v1621 = vpop.permute.xlu0 %1620
        %1624 = vset.pattern.permute.xlu0 0
        %1625 = vperm.xlu0 %1624, %v1594
        %v1626 = vpop.permute.xlu0 %1625
        %1629 = vset.pattern.permute.xlu0 0
        %1630 = vperm.xlu0 %1629, %v1595
        %v1631 = vpop.permute.xlu0 %1630
        %1634 = vset.pattern.permute.xlu0 0
        %1635 = vperm.xlu0 %1634, %v1596
        %v1636 = vpop.permute.xlu0 %1635
        %v1638 = vlaneseq
        %v1639 = vshrl.u32 %v1638, 7
        %v1640 = vsub.s32 0, %v1639
        %v1641 = vrot.slane %v1597, %v1640
        %v1642 = vsub.f32 %v1601, %v1641
        %v1643 = vsub.f32 %v1606, %v1641
        %v1644 = vsub.f32 %v1611, %v1641
        %v1645 = vsub.f32 %v1616, %v1641
        %v1646 = vsub.f32 %v1621, %v1641
        %v1647 = vsub.f32 %v1626, %v1641
        %v1648 = vsub.f32 %v1631, %v1641
        %v1649 = vsub.f32 %v1636, %v1641
        %v1650 = vmul.f32 %v1642, %v1642
        %v1651 = vmul.f32 %v1643, %v1643
        %v1652 = vmul.f32 %v1644, %v1644
        %v1653 = vmul.f32 %v1645, %v1645
        %v1654 = vmul.f32 %v1646, %v1646
        %v1655 = vmul.f32 %v1647, %v1647
        %v1656 = vmul.f32 %v1648, %v1648
        %v1657 = vmul.f32 %v1649, %v1649
        %1658 = vset.pattern.permute.xlu0 1
        %1659 = vperm.xlu0 %1658, %v1589
        %v1660 = vpop.permute.xlu0 %1659
        %1662 = vset.pattern.permute.xlu0 1
        %1663 = vperm.xlu0 %1662, %v1590
        %v1664 = vpop.permute.xlu0 %1663
        %1666 = vset.pattern.permute.xlu0 1
        %1667 = vperm.xlu0 %1666, %v1591
        %v1668 = vpop.permute.xlu0 %1667
        %1670 = vset.pattern.permute.xlu0 1
        %1671 = vperm.xlu0 %1670, %v1592
        %v1672 = vpop.permute.xlu0 %1671
        %1674 = vset.pattern.permute.xlu0 1
        %1675 = vperm.xlu0 %1674, %v1593
        %v1676 = vpop.permute.xlu0 %1675
        %1678 = vset.pattern.permute.xlu0 1
        %1679 = vperm.xlu0 %1678, %v1594
        %v1680 = vpop.permute.xlu0 %1679
        %1682 = vset.pattern.permute.xlu0 1
        %1683 = vperm.xlu0 %1682, %v1595
        %v1684 = vpop.permute.xlu0 %1683
        %1686 = vset.pattern.permute.xlu0 1
        %1687 = vperm.xlu0 %1686, %v1596
        %v1688 = vpop.permute.xlu0 %1687
        %v1690 = vlaneseq
        %v1691 = vshrl.u32 %v1690, 7
        %v1692 = vsub.s32 1, %v1691
        %v1693 = vrot.slane %v1597, %v1692
        %v1694 = vsub.f32 %v1660, %v1693
        %v1695 = vsub.f32 %v1664, %v1693
        %v1696 = vsub.f32 %v1668, %v1693
        %v1697 = vsub.f32 %v1672, %v1693
        %v1698 = vsub.f32 %v1676, %v1693
        %v1699 = vsub.f32 %v1680, %v1693
        %v1700 = vsub.f32 %v1684, %v1693
        %v1701 = vsub.f32 %v1688, %v1693
        %v1702 = vmul.f32 %v1694, %v1694
        %v1703 = vmul.f32 %v1695, %v1695
        %v1704 = vmul.f32 %v1696, %v1696
        %v1705 = vmul.f32 %v1697, %v1697
        %v1706 = vmul.f32 %v1698, %v1698
        %v1707 = vmul.f32 %v1699, %v1699
        %v1708 = vmul.f32 %v1700, %v1700
        %v1709 = vmul.f32 %v1701, %v1701
        %v1710 = vadd.f32 %v1650, %v1702
        %v1711 = vadd.f32 %v1651, %v1703
        %v1712 = vadd.f32 %v1652, %v1704
        %v1713 = vadd.f32 %v1653, %v1705
        %v1714 = vadd.f32 %v1654, %v1706
        %v1715 = vadd.f32 %v1655, %v1707
        %v1716 = vadd.f32 %v1656, %v1708
        %v1717 = vadd.f32 %v1657, %v1709
        %1718 = vset.pattern.permute.xlu0 2
        %1719 = vperm.xlu0 %1718, %v1589
        %v1720 = vpop.permute.xlu0 %1719
        %1722 = vset.pattern.permute.xlu0 2
        %1723 = vperm.xlu0 %1722, %v1590
        %v1724 = vpop.permute.xlu0 %1723
        %1726 = vset.pattern.permute.xlu0 2
        %1727 = vperm.xlu0 %1726, %v1591
        %v1728 = vpop.permute.xlu0 %1727
        %1730 = vset.pattern.permute.xlu0 2
        %1731 = vperm.xlu0 %1730, %v1592
        %v1732 = vpop.permute.xlu0 %1731
        %1734 = vset.pattern.permute.xlu0 2
        %1735 = vperm.xlu0 %1734, %v1593
        %v1736 = vpop.permute.xlu0 %1735
        %1738 = vset.pattern.permute.xlu0 2
        %1739 = vperm.xlu0 %1738, %v1594
        %v1740 = vpop.permute.xlu0 %1739
        %1742 = vset.pattern.permute.xlu0 2
        %1743 = vperm.xlu0 %1742, %v1595
        %v1744 = vpop.permute.xlu0 %1743
        %1746 = vset.pattern.permute.xlu0 2
        %1747 = vperm.xlu0 %1746, %v1596
        %v1748 = vpop.permute.xlu0 %1747
        %v1750 = vlaneseq
        %v1751 = vshrl.u32 %v1750, 7
        %v1752 = vsub.s32 2, %v1751
        %v1753 = vrot.slane %v1597, %v1752
        %v1754 = vsub.f32 %v1720, %v1753
        %v1755 = vsub.f32 %v1724, %v1753
        %v1756 = vsub.f32 %v1728, %v1753
        %v1757 = vsub.f32 %v1732, %v1753
        %v1758 = vsub.f32 %v1736, %v1753
        %v1759 = vsub.f32 %v1740, %v1753
        %v1760 = vsub.f32 %v1744, %v1753
        %v1761 = vsub.f32 %v1748, %v1753
        %v1762 = vmul.f32 %v1754, %v1754
        %v1763 = vmul.f32 %v1755, %v1755
        %v1764 = vmul.f32 %v1756, %v1756
        %v1765 = vmul.f32 %v1757, %v1757
        %v1766 = vmul.f32 %v1758, %v1758
        %v1767 = vmul.f32 %v1759, %v1759
        %v1768 = vmul.f32 %v1760, %v1760
        %v1769 = vmul.f32 %v1761, %v1761
        %v1770 = vadd.f32 %v1710, %v1762
        %v1771 = vadd.f32 %v1711, %v1763
        %v1772 = vadd.f32 %v1712, %v1764
        %v1773 = vadd.f32 %v1713, %v1765
        %v1774 = vadd.f32 %v1714, %v1766
        %v1775 = vadd.f32 %v1715, %v1767
        %v1776 = vadd.f32 %v1716, %v1768
        %v1777 = vadd.f32 %v1717, %v1769
        %1778 = vmin.xlane.f32.xlu0 %v1770
        %v1779 = vpop.xlane.xlu0 %1778
        %1780 = vmin.xlane.f32.xlu0 %v1771
        %v1781 = vpop.xlane.xlu0 %1780
        %1782 = vmin.xlane.f32.xlu0 %v1772
        %v1783 = vpop.xlane.xlu0 %1782
        %1784 = vmin.xlane.f32.xlu0 %v1773
        %v1785 = vpop.xlane.xlu0 %1784
        %1786 = vmin.xlane.f32.xlu0 %v1774
        %v1787 = vpop.xlane.xlu0 %1786
        %1788 = vmin.xlane.f32.xlu0 %v1775
        %v1789 = vpop.xlane.xlu0 %1788
        %1790 = vmin.xlane.f32.xlu0 %v1776
        %v1791 = vpop.xlane.xlu0 %1790
        %1792 = vmin.xlane.f32.xlu0 %v1777
        %v1793 = vpop.xlane.xlu0 %1792
        %v1794 = vrsqrt.pop %v1779
        %v1795 = vmul.f32 %v1779, %v1794
        %vm1796 = vcmp.eq.f32.partialorder %v1779, inf
        %v1797 = vsel %vm1796, %v1779, %v1795
        %vm1798 = vcmp.eq.f32.partialorder %v1779, 0.0
        %v1799 = vand.u32 %v1779, 2147483648
        %v1800 = vsel %vm1798, %v1799, %v1797
        %v1801 = vrsqrt.pop %v1781
        %v1802 = vmul.f32 %v1781, %v1801
        %vm1803 = vcmp.eq.f32.partialorder %v1781, inf
        %v1804 = vsel %vm1803, %v1781, %v1802
        %vm1805 = vcmp.eq.f32.partialorder %v1781, 0.0
        %v1806 = vand.u32 %v1781, 2147483648
        %v1807 = vsel %vm1805, %v1806, %v1804
        %v1808 = vrsqrt.pop %v1783
        %v1809 = vmul.f32 %v1783, %v1808
        %vm1810 = vcmp.eq.f32.partialorder %v1783, inf
        %v1811 = vsel %vm1810, %v1783, %v1809
        %vm1812 = vcmp.eq.f32.partialorder %v1783, 0.0
        %v1813 = vand.u32 %v1783, 2147483648
        %v1814 = vsel %vm1812, %v1813, %v1811
        %v1815 = vrsqrt.pop %v1785
        %v1816 = vmul.f32 %v1785, %v1815
        %vm1817 = vcmp.eq.f32.partialorder %v1785, inf
        %v1818 = vsel %vm1817, %v1785, %v1816
        %vm1819 = vcmp.eq.f32.partialorder %v1785, 0.0
        %v1820 = vand.u32 %v1785, 2147483648
        %v1821 = vsel %vm1819, %v1820, %v1818
        %v1822 = vrsqrt.pop %v1787
        %v1823 = vmul.f32 %v1787, %v1822
        %vm1824 = vcmp.eq.f32.partialorder %v1787, inf
        %v1825 = vsel %vm1824, %v1787, %v1823
        %vm1826 = vcmp.eq.f32.partialorder %v1787, 0.0
        %v1827 = vand.u32 %v1787, 2147483648
        %v1828 = vsel %vm1826, %v1827, %v1825
        %v1829 = vrsqrt.pop %v1789
        %v1830 = vmul.f32 %v1789, %v1829
        %vm1831 = vcmp.eq.f32.partialorder %v1789, inf
        %v1832 = vsel %vm1831, %v1789, %v1830
        %vm1833 = vcmp.eq.f32.partialorder %v1789, 0.0
        %v1834 = vand.u32 %v1789, 2147483648
        %v1835 = vsel %vm1833, %v1834, %v1832
        %v1836 = vrsqrt.pop %v1791
        %v1837 = vmul.f32 %v1791, %v1836
        %vm1838 = vcmp.eq.f32.partialorder %v1791, inf
        %v1839 = vsel %vm1838, %v1791, %v1837
        %vm1840 = vcmp.eq.f32.partialorder %v1791, 0.0
        %v1841 = vand.u32 %v1791, 2147483648
        %v1842 = vsel %vm1840, %v1841, %v1839
        %v1843 = vrsqrt.pop %v1793
        %v1844 = vmul.f32 %v1793, %v1843
        %vm1845 = vcmp.eq.f32.partialorder %v1793, inf
        %v1846 = vsel %vm1845, %v1793, %v1844
        %vm1847 = vcmp.eq.f32.partialorder %v1793, 0.0
        %v1848 = vand.u32 %v1793, 2147483648
        %v1849 = vsel %vm1847, %v1848, %v1846
        %v1850 = vsub.f32 0.0, %v1800
        %v1851 = vsub.f32 0.0, %v1807
        %v1852 = vsub.f32 0.0, %v1814
        %v1853 = vsub.f32 0.0, %v1821
        %v1854 = vsub.f32 0.0, %v1828
        %v1855 = vsub.f32 0.0, %v1835
        %v1856 = vsub.f32 0.0, %v1842
        %v1857 = vsub.f32 0.0, %v1849
        %v1858 = vmul.f32 %v1850, 1.442695
        %v1859 = vpow.pop %v1858
        %v1860 = vmul.f32 %v1851, 1.442695
        %v1861 = vpow.pop %v1860
        %v1862 = vmul.f32 %v1852, 1.442695
        %v1863 = vpow.pop %v1862
        %v1864 = vmul.f32 %v1853, 1.442695
        %v1865 = vpow.pop %v1864
        %v1866 = vmul.f32 %v1854, 1.442695
        %v1867 = vpow.pop %v1866
        %v1868 = vmul.f32 %v1855, 1.442695
        %v1869 = vpow.pop %v1868
        %v1870 = vmul.f32 %v1856, 1.442695
        %v1871 = vpow.pop %v1870
        %v1872 = vmul.f32 %v1857, 1.442695
        %v1873 = vpow.pop %v1872
        %v1874 = vld [vmem:[%s397] sm:$0xff]
        %v1875 = vld [vmem:[%s397 + $0x8] sm:$0xff]
        %v1876 = vld [vmem:[%s397 + $0x10] sm:$0xff]
        %v1877 = vld [vmem:[%s397 + $0x18] sm:$0xff]
        %v1878 = vld [vmem:[%s397 + $0x20] sm:$0xff]
        %v1879 = vld [vmem:[%s397 + $0x28] sm:$0xff]
        %v1880 = vld [vmem:[%s397 + $0x30] sm:$0xff]
        %v1881 = vld [vmem:[%s397 + $0x38] sm:$0xff]
        %v1882 = vsub.f32 %v1874, %v1859
        %v1883 = vsub.f32 %v1875, %v1861
        %v1884 = vsub.f32 %v1876, %v1863
        %v1885 = vsub.f32 %v1877, %v1865
        %v1886 = vsub.f32 %v1878, %v1867
        %v1887 = vsub.f32 %v1879, %v1869
        %v1888 = vsub.f32 %v1880, %v1871
        %v1889 = vsub.f32 %v1881, %v1873
        %v1890 = vmul.f32 %v1882, %v1882
        %v1891 = vmul.f32 %v1883, %v1883
        %v1892 = vmul.f32 %v1884, %v1884
        %v1893 = vmul.f32 %v1885, %v1885
        %v1894 = vmul.f32 %v1886, %v1886
        %v1895 = vmul.f32 %v1887, %v1887
        %v1896 = vmul.f32 %v1888, %v1888
        %v1897 = vmul.f32 %v1889, %v1889
        %v1898 = vsel %vm1094, %v1890, 0.0
        %v1899 = vsel %vm1094, %v1891, 0.0
        %v1900 = vadd.f32 %v1898, %v1899
        %v1901 = vsel %vm1094, %v1892, 0.0
        %v1902 = vadd.f32 %v1900, %v1901
        %v1903 = vsel %vm1094, %v1893, 0.0
        %v1904 = vadd.f32 %v1902, %v1903
        %v1905 = vsel %vm1094, %v1894, 0.0
        %v1906 = vadd.f32 %v1904, %v1905
        %v1907 = vsel %vm1094, %v1895, 0.0
        %v1908 = vadd.f32 %v1906, %v1907
        %v1909 = vsel %vm1094, %v1896, 0.0
        %v1910 = vadd.f32 %v1908, %v1909
        %v1911 = vsel %vm1094, %v1897, 0.0
        %v1912 = vadd.f32 %v1910, %v1911
        %1913 = vadd.xlane.f32.xlu0 %v1912
        %v1914 = vpop.xlane.xlu0 %1913
        %v1915 = vrot.slane %v1914, 4
        %v1916 = vadd.f32 %v1914, %v1915
        %v1917 = vrot.slane %v1916, 2
        %v1918 = vadd.f32 %v1916, %v1917
        %v1919 = vrot.slane %v1918, 1
        %v1920 = vadd.f32 %v1918, %v1919
        %s1921 = vtos %v1920
        %v1922 = vlaneseq
        %v1923 = vand.u32 %v1922, 127
        %vm1924 = vcmp.eq.s32.totalorder %v1923, 0
        %vm1925 = vcmp.eq.s32.totalorder %v1923, 1
        %vm1926 = vcmp.eq.s32.totalorder %v1923, 2
        %v1927 = vstv %s1921
        %v1928 = vsel %vm1926, %v1927, 0.0
        %v1929 = vstv %s1543
        %v1930 = vsel %vm1925, %v1929, %v1928
        %v1931 = vstv %s1134
        %v1932 = vsel %vm1924, %v1931, %v1930
        %1933 = vst [vmem:[%s359] sm:$0x1] %v1932
        %s1934 = sand.u32 %s185, 1
        %s1935 = scalar_lea.sflag [#allocation3], %s1934
        %s1936 = sand.u32 %s185, 1
        %s1937 = scalar_lea.vmem [#allocation2], %s1936
        %s1938 = sand.u32 %s26, 1
        %s1939 = scalar_lea.sflag [#allocation5], %s1938
        %s1940 = sand.u32 %s211, 1
        %s1941 = smul.addr %s1940, 2
        %s1942 = scalar_lea.vmem [#allocation4], %s1941
        %s1943 = sand.u32 %s26, 1
        %s1944 = scalar_lea.sflag [#allocation5], %s1943
        %s1945 = sand.u32 %s237, 1
        %s1946 = smul.addr %s1945, 2
        %s1947 = scalar_lea.vmem [#allocation6], %s1946
        // Predicated region
        $region45: #{tpu_custom_call.1} parent=43 // pred_check
          %p1948 = pneg %p195
        $region46: #{tpu_custom_call.1} parent=43 // pred_check_branch
          %1950 = sbr.rel (%p1948) target = $region48
        $region47: #{tpu_custom_call.1} parent=43 // pred_region
          %s1952 = ssub.s32 16, 16
          %1953 = vsyncadd %s1935, %s1952
          %s1954 = smul.addr %s26, 16
          %s1955 = scalar_lea.hbm %s6, %s1954
          %s1957 = sshll.u32 %s1937, 4
          %s1958 = int_to_ptr.vmem [resolvable:$true] %s1957
          %1960 = dma.vmem_to_hbm [thread:$0]  %s1958, 16, %s1955, %s1935
        $region48: #{tpu_custom_call.1} parent=43 // pred_fallthru
          _
        // Predicated region
        $region49: #{tpu_custom_call.1} parent=43 // pred_check
          %p1961 = pneg %p221
        $region50: #{tpu_custom_call.1} parent=43 // pred_check_branch
          %1963 = sbr.rel (%p1961) target = $region52
        $region51: #{tpu_custom_call.1} parent=43 // pred_region
          %s1965 = ssub.s32 32, 32
          %1966 = vsyncadd %s1939, %s1965
          %s1967 = smul.addr %s26, 2
          %s1968 = smul.addr %s1967, 16
          %s1969 = scalar_lea.hbm %s7, %s1968
          %s1971 = sshll.u32 %s1942, 4
          %s1972 = int_to_ptr.vmem [resolvable:$true] %s1971
          %1974 = dma.vmem_to_hbm [thread:$0]  %s1972, 32, %s1969, %s1939
        $region52: #{tpu_custom_call.1} parent=43 // pred_fallthru
          _
        // Predicated region
        $region53: #{tpu_custom_call.1} parent=43 // pred_check
          %p1975 = pneg %p247
        $region54: #{tpu_custom_call.1} parent=43 // pred_check_branch
          %1977 = sbr.rel (%p1975) target = $region56
        $region55: #{tpu_custom_call.1} parent=43 // pred_region
          %s1979 = ssub.s32 32, 32
          %1980 = vsyncadd %s1944, %s1979
          %s1981 = smul.addr %s26, 2
          %s1982 = smul.addr %s1981, 16
          %s1983 = scalar_lea.hbm %s8, %s1982
          %s1985 = sshll.u32 %s1947, 4
          %s1986 = int_to_ptr.vmem [resolvable:$true] %s1985
          %1988 = dma.vmem_to_hbm [thread:$0]  %s1986, 32, %s1983, %s1944
        $region56: #{tpu_custom_call.1} parent=43 // pred_fallthru
          _
      $region44: #{tpu_custom_call.1} parent=5 // pred_fallthru
        _
      %p1989 = scmp.le.s32.totalorder 2, %s21
      // Predicated region
      $region57: #{tpu_custom_call.1} parent=5 // pred_check
        %p1990 = pneg %p1989
      $region58: #{tpu_custom_call.1} parent=5 // pred_check_branch
        %1992 = sbr.rel (%p1990) target = $region60
      $region59: #{tpu_custom_call.1} parent=5 // pred_region
        %s1993 = ssub.s32 %s21, 2
        // Predicated region
        $region61: #{tpu_custom_call.1} parent=59 // pred_check
          %p1994 = pneg %p201
        $region62: #{tpu_custom_call.1} parent=59 // pred_check_branch
          %1996 = sbr.rel (%p1994) target = $region64
        $region63: #{tpu_custom_call.1} parent=59 // pred_region
          %s1997 = sand.u32 %s186, 1
          %s1998 = scalar_lea.sflag [#allocation3], %s1997
          %s1999 = sand.u32 %s186, 1
          %s2000 = scalar_lea.vmem [#allocation2], %s1999
          %2001 = dma.done %s1998, 16
        $region64: #{tpu_custom_call.1} parent=59 // pred_fallthru
          _
        // Predicated region
        $region65: #{tpu_custom_call.1} parent=59 // pred_check
          %p2002 = pneg %p227
        $region66: #{tpu_custom_call.1} parent=59 // pred_check_branch
          %2004 = sbr.rel (%p2002) target = $region68
        $region67: #{tpu_custom_call.1} parent=59 // pred_region
          %s2005 = sand.u32 %s27, 1
          %s2006 = scalar_lea.sflag [#allocation5], %s2005
          %s2007 = sand.u32 %s212, 1
          %s2008 = smul.addr %s2007, 2
          %s2009 = scalar_lea.vmem [#allocation4], %s2008
          %2010 = dma.done %s2006, 32
        $region68: #{tpu_custom_call.1} parent=59 // pred_fallthru
          _
        // Predicated region
        $region69: #{tpu_custom_call.1} parent=59 // pred_check
          %p2011 = pneg %p253
        $region70: #{tpu_custom_call.1} parent=59 // pred_check_branch
          %2013 = sbr.rel (%p2011) target = $region72
        $region71: #{tpu_custom_call.1} parent=59 // pred_region
          %s2014 = sand.u32 %s27, 1
          %s2015 = scalar_lea.sflag [#allocation5], %s2014
          %s2016 = sand.u32 %s238, 1
          %s2017 = smul.addr %s2016, 2
          %s2018 = scalar_lea.vmem [#allocation6], %s2017
          %2019 = dma.done %s2015, 32
        $region72: #{tpu_custom_call.1} parent=59 // pred_fallthru
          _
      $region60: #{tpu_custom_call.1} parent=5 // pred_fallthru
        _
    $region6: #{tpu_custom_call.1} parent=1 // loop_footer
      %s25 = sadd.s32 1, %s21
    $region7: #{tpu_custom_call.1} parent=1 // loop_footer_branch
      %20 = sbr.rel target = $region3
    $region8: #{tpu_custom_call.1} parent=1 // loop_exit
      _
    %2020 = vsyncpa [#allocation3], 1
    %s2021 = scalar_lea.sflag [#allocation3], 1
    %2022 = vsyncpa %s2021, 1
    %2023 = vsyncpa [#allocation5], 1
    %s2024 = scalar_lea.sflag [#allocation5], 1
    %2025 = vsyncpa %s2024, 1

</llo_original>
